<compile_context>
chip_gen: v5e
topology: v5e:2x2
jax: 0.10.0
libtpu: 0.0.40
codegen_flags: <defaults>
</compile_context>

<pallas_src>
import functools
import math

import jax
import jax.numpy as jnp
from jax import lax
from jax.experimental import pallas as pl
from jax.experimental.pallas import tpu as pltpu

_LN_EPS = 1e-5


# ---------------------------------------------------------------------------
# Per-generation tuning (v5e/v6e: 128 MiB VMEM; v7x: 64 MiB per TensorCore)
# ---------------------------------------------------------------------------
def _vmem_capacity_bytes():
    try:
        cap = pltpu.get_tpu_info().vmem_capacity_bytes
        if cap:
            return int(cap)
    except Exception:
        pass
    return 64 * 1024 * 1024  # conservative default (v7x-sized)


_VMEM_CAP = _vmem_capacity_bytes()
if _VMEM_CAP >= 100 * 1024 * 1024:        # v5e / v6e
    _VMEM_LIMIT = 96 * 1024 * 1024
    _DEFAULT_BLOCK_ROWS = 512
else:                                     # v7x
    _VMEM_LIMIT = 48 * 1024 * 1024
    _DEFAULT_BLOCK_ROWS = 256


def _gelu_tanh(x):
    c = 0.7978845608028654  # sqrt(2/pi)
    return 0.5 * x * (1.0 + jnp.tanh(c * (x + 0.044715 * (x * x * x))))


def _layernorm_f32(x, gamma, beta):
    mu = jnp.mean(x, axis=-1, keepdims=True)
    var = jnp.mean(jnp.square(x - mu), axis=-1, keepdims=True)
    return (x - mu) * lax.rsqrt(var + _LN_EPS) * gamma + beta


# ---------------------------------------------------------------------------
# Kernel 1: per-batch-element  LN(x) -> fused QKV -> all-heads attention ->
#           + LN(x) residual.   grid=(B,); xn / qkv stay VMEM-resident.
# ---------------------------------------------------------------------------
def _ln_attn_kernel(x_ref, g_ref, b_ref, wqkv_ref, bqkv_ref, y_ref,
                    *, num_heads, inv_scale):
    S, D = x_ref.shape
    dh = D // num_heads

    x = x_ref[...].astype(jnp.float32)
    xn = _layernorm_f32(x, g_ref[...].astype(jnp.float32),
                        b_ref[...].astype(jnp.float32))            # (S, D)

    qkv = jnp.dot(xn.astype(wqkv_ref.dtype), wqkv_ref[...],
                  preferred_element_type=jnp.float32)
    qkv = qkv + bqkv_ref[...].astype(jnp.float32)                  # (S, 3D)

    # Static per-head loop; every head stores straight into its output slice
    # (no concatenate, bounded live ranges).
    # TODO(synk): for real dims (dh=64) a head-major wqkv column layout (or
    # processing heads in 128-lane pairs) would keep all slices 128-aligned.
    for h in range(num_heads):
        q_h = qkv[:, h * dh:(h + 1) * dh]
        k_h = qkv[:, D + h * dh:D + (h + 1) * dh]
        v_h = qkv[:, 2 * D + h * dh:2 * D + (h + 1) * dh]
        s = lax.dot_general(q_h, k_h, (((1,), (1,)), ((), ())),
                            preferred_element_type=jnp.float32)
        s = s * inv_scale                      # scores / sqrt(valid_lens)
        s = s - jnp.max(s, axis=-1, keepdims=True)
        p = jnp.exp(s)
        # TODO(synk): approx=True (EUP slot, ~free) once tolerance allows;
        # kept exact to hold the tight f32 unit-test check below.
        p = p * pl.reciprocal(jnp.sum(p, axis=-1, keepdims=True), approx=False)
        o_h = jnp.dot(p.astype(v_h.dtype), v_h,
                      preferred_element_type=jnp.float32)
        y_ref[:, h * dh:(h + 1) * dh] = (
            o_h + xn[:, h * dh:(h + 1) * dh]).astype(y_ref.dtype)


def ln_qkv_attention(x, gamma, beta, wqkv, bqkv, *, num_heads, valid_lens):
    B, S, D = x.shape
    D3 = wqkv.shape[1]
    dh = D // num_heads
    inv_scale = float(1.0 / math.sqrt(float(valid_lens)))
    kernel = functools.partial(_ln_attn_kernel, num_heads=num_heads,
                               inv_scale=inv_scale)
    cost = pl.CostEstimate(
        flops=2 * B * S * D * D3 + 4 * B * num_heads * S * S * dh,
        transcendentals=B * S + B * num_heads * S * S,
        bytes_accessed=(2 * B * S * D + D * D3 + D3) * x.dtype.itemsize)
    return pl.pallas_call(
        kernel,
        out_shape=jax.ShapeDtypeStruct((B, S, D), x.dtype),
        grid_spec=pltpu.PrefetchScalarGridSpec(
            num_scalar_prefetch=0,
            grid=(B,),
            in_specs=[
                pl.BlockSpec((None, S, D), lambda b: (b, 0, 0)),
                pl.BlockSpec((1, D), lambda b: (0, 0)),
                pl.BlockSpec((1, D), lambda b: (0, 0)),
                pl.BlockSpec((D, D3), lambda b: (0, 0)),
                pl.BlockSpec((1, D3), lambda b: (0, 0)),
            ],
            out_specs=pl.BlockSpec((None, S, D), lambda b: (b, 0, 0)),
        ),
        compiler_params=pltpu.CompilerParams(
            dimension_semantics=("parallel",),
            vmem_limit_bytes=_VMEM_LIMIT),
        cost_estimate=cost,
    )(x, gamma.reshape(1, D), beta.reshape(1, D), wqkv, bqkv.reshape(1, D3))


# ---------------------------------------------------------------------------
# Kernel 2: row-tiled  LN(y) -> Linear -> GELU -> Linear  -> + y residual
# ---------------------------------------------------------------------------
def _ln_mlp_kernel(y_ref, g_ref, b_ref, w1_ref, b1_ref, w2_ref, b2_ref, o_ref):
    y = y_ref[...].astype(jnp.float32)
    yn = _layernorm_f32(y, g_ref[...].astype(jnp.float32),
                        b_ref[...].astype(jnp.float32))
    h = jnp.dot(yn.astype(w1_ref.dtype), w1_ref[...],
                preferred_element_type=jnp.float32)
    h = _gelu_tanh(h + b1_ref[...].astype(jnp.float32))
    out = jnp.dot(h.astype(w2_ref.dtype), w2_ref[...],
                  preferred_element_type=jnp.float32)
    o_ref[...] = (y + out + b2_ref[...].astype(jnp.float32)).astype(o_ref.dtype)


def ln_mlp(y2d, gamma, beta, w1, b1, w2, b2, *, block_rows=None):
    N, D = y2d.shape
    H1 = w1.shape[1]
    if block_rows is None:
        block_rows = _DEFAULT_BLOCK_ROWS
    tm = N if N <= block_rows else block_rows
    cost = pl.CostEstimate(
        flops=2 * N * D * H1 + 2 * N * H1 * D,
        transcendentals=N * (H1 + 1),
        bytes_accessed=(2 * N * D + D * H1 + H1 * D) * y2d.dtype.itemsize)
    return pl.pallas_call(
        _ln_mlp_kernel,
        out_shape=jax.ShapeDtypeStruct((N, D), y2d.dtype),
        grid_spec=pltpu.PrefetchScalarGridSpec(
            num_scalar_prefetch=0,
            grid=(pl.cdiv(N, tm),),
            in_specs=[
                pl.BlockSpec((tm, D), lambda i: (i, 0)),
                pl.BlockSpec((1, D), lambda i: (0, 0)),
                pl.BlockSpec((1, D), lambda i: (0, 0)),
                pl.BlockSpec((D, H1), lambda i: (0, 0)),
                pl.BlockSpec((1, H1), lambda i: (0, 0)),
                pl.BlockSpec((H1, D), lambda i: (0, 0)),
                pl.BlockSpec((1, D), lambda i: (0, 0)),
            ],
            out_specs=pl.BlockSpec((tm, D), lambda i: (i, 0)),
        ),
        compiler_params=pltpu.CompilerParams(
            dimension_semantics=("parallel",),
            vmem_limit_bytes=_VMEM_LIMIT),
        cost_estimate=cost,
    )(y2d, gamma.reshape(1, D), beta.reshape(1, D),
      w1, b1.reshape(1, H1), w2, b2.reshape(1, D))


# ---------------------------------------------------------------------------
# Vit_Block forward (the only inter-kernel reshape is metadata-only)
# ---------------------------------------------------------------------------
def vit_block(params, x, *, num_heads, valid_lens, block_rows=None):
    B, S, D = x.shape
    y = ln_qkv_attention(x, params["ln_g"], params["ln_b"],
                         params["wqkv"], params["bqkv"],
                         num_heads=num_heads, valid_lens=valid_lens)
    out2d = ln_mlp(y.reshape(B * S, D), params["ln_g"], params["ln_b"],
                   params["w1"], params["b1"], params["w2"], params["b2"],
                   block_rows=block_rows)
    return out2d.reshape(B, S, D)


# ---------------------------------------------------------------------------
# Parameter init (mirrors PyTorch defaults; weights stored as (Din, Dout))
# ---------------------------------------------------------------------------
def init_params(key, hidden_dim):
    ks = jax.random.split(key, 12)
    s = 1.0 / math.sqrt(hidden_dim)

    def u(k, shape):
        return jax.random.uniform(k, shape, jnp.float32, -s, s)

    wq, bq = u(ks[0], (hidden_dim, hidden_dim)), u(ks[1], (hidden_dim,))
    wk, bk = u(ks[2], (hidden_dim, hidden_dim)), u(ks[3], (hidden_dim,))
    wv, bv = u(ks[4], (hidden_dim, hidden_dim)), u(ks[5], (hidden_dim,))
    return {
        "ln_g": jnp.ones((hidden_dim,), jnp.float32),
        "ln_b": jnp.zeros((hidden_dim,), jnp.float32),
        "wqkv": jnp.concatenate([wq, wk, wv], axis=1),   # fused QKV weight
        "bqkv": jnp.concatenate([bq, bk, bv], axis=0),
        # weight_o is created by the PyTorch __init__ but unused by forward()
        "wo": u(ks[6], (hidden_dim, hidden_dim)), "bo": u(ks[7], (hidden_dim,)),
        "w1": u(ks[8], (hidden_dim, hidden_dim)), "b1": u(ks[9], (hidden_dim,)),
        "w2": u(ks[10], (hidden_dim, hidden_dim)), "b2": u(ks[11], (hidden_dim,)),
    }


# ---------------------------------------------------------------------------
# Pure-JAX reference mirroring the PyTorch forward (eval mode)
# ---------------------------------------------------------------------------
def reference(params, x, *, num_heads, valid_lens):
    def ln(z):
        mu = z.mean(-1, keepdims=True)
        var = ((z - mu) ** 2).mean(-1, keepdims=True)
        return (z - mu) / jnp.sqrt(var + _LN_EPS) * params["ln_g"] + params["ln_b"]

    D = x.shape[-1]
    wq, wk, wv = (params["wqkv"][:, :D], params["wqkv"][:, D:2 * D],
                  params["wqkv"][:, 2 * D:])
    bq, bk, bv = (params["bqkv"][:D], params["bqkv"][D:2 * D],
                  params["bqkv"][2 * D:])

    def t_qkv(z):
        Bz, Sz, Dz = z.shape
        z = z.reshape(Bz, Sz, num_heads, Dz // num_heads)
        return jnp.transpose(z, (0, 2, 1, 3)).reshape(Bz * num_heads, Sz, -1)

    xn = ln(x)
    q, k, v = t_qkv(xn @ wq + bq), t_qkv(xn @ wk + bk), t_qkv(xn @ wv + bv)
    s = jnp.einsum("bqd,bkd->bqk", q, k) / jnp.sqrt(jnp.float32(valid_lens))
    p = jax.nn.softmax(s, axis=-1)
    o = jnp.einsum("bqk,bkd->bqd", p, v)
    BH, Sq, dh = o.shape
    attn = o.reshape(-1, num_heads, Sq, dh).transpose(0, 2, 1, 3).reshape(-1, Sq, D)

    out = attn + xn
    y = out
    out = ln(out)
    mlp = _gelu_tanh(out @ params["w1"] + params["b1"]) @ params["w2"] + params["b2"]
    return y + mlp


if __name__ == "__main__":
    B, S, hidden, heads = 2, 8, 32, 4
    valid_lens = 8.0  # compile-time constant of the Vit_Block

    key = jax.random.PRNGKey(0)
    kp, kx = jax.random.split(key)
    params = init_params(kp, hidden)
    x = jax.random.normal(kx, (B, S, hidden), jnp.float32)

    fwd = jax.jit(functools.partial(vit_block, num_heads=heads,
                                    valid_lens=valid_lens))
    out = jax.block_until_ready(fwd(params, x))

    ref = reference(params, x, num_heads=heads, valid_lens=valid_lens)
    assert out.shape == (B, S, hidden), out.shape
    max_err = float(jnp.max(jnp.abs(out - ref)))
    assert jnp.allclose(out, ref, atol=2e-4, rtol=2e-4), max_err
    print("KERNEL_OK")
</pallas_src>

<mosaic_0001>
module attributes {stable_mosaic.version = 11 : i64} {
  func.func @_ln_attn_kernel(%arg0: i32, %arg1: memref<1x8x32xf32, #tpu.memory_space<vmem>>, %arg2: memref<1x32xf32, #tpu.memory_space<vmem>>, %arg3: memref<1x32xf32, #tpu.memory_space<vmem>>, %arg4: memref<32x96xf32, #tpu.memory_space<vmem>>, %arg5: memref<1x96xf32, #tpu.memory_space<vmem>>, %arg6: memref<1x8x32xf32, #tpu.memory_space<vmem>>) attributes {dimension_semantics = [#tpu.dimension_semantics<parallel>], iteration_bounds = array<i64: 2>, scalar_prefetch = 0 : i64, scratch_operands = 0 : i64, tpu.core_type = #tpu.core_type<tc>, window_params = [{transform_indices = @transform_0, window_bounds = array<i64: 1, 8, 32>}, {pipeline_mode = #tpu.pipeline_mode<synchronous>, transform_indices = @transform_1, window_bounds = array<i64: 1, 32>}, {pipeline_mode = #tpu.pipeline_mode<synchronous>, transform_indices = @transform_2, window_bounds = array<i64: 1, 32>}, {pipeline_mode = #tpu.pipeline_mode<synchronous>, transform_indices = @transform_3, window_bounds = array<i64: 32, 96>}, {pipeline_mode = #tpu.pipeline_mode<synchronous>, transform_indices = @transform_4, window_bounds = array<i64: 1, 96>}, {transform_indices = @transform_5, window_bounds = array<i64: 1, 8, 32>}]} {
    %c0 = arith.constant 0 : index
    %c0_0 = arith.constant 0 : index
    %c0_1 = arith.constant 0 : index
    %0 = vector.load %arg1[%c0, %c0_0, %c0_1] : memref<1x8x32xf32, #tpu.memory_space<vmem>>, vector<1x8x32xf32>
    %1 = vector.shape_cast %0 : vector<1x8x32xf32> to vector<8x32xf32>
    %c0_2 = arith.constant 0 : index
    %c0_3 = arith.constant 0 : index
    %2 = vector.load %arg2[%c0_2, %c0_3] : memref<1x32xf32, #tpu.memory_space<vmem>>, vector<1x32xf32>
    %c0_4 = arith.constant 0 : index
    %c0_5 = arith.constant 0 : index
    %3 = vector.load %arg3[%c0_4, %c0_5] : memref<1x32xf32, #tpu.memory_space<vmem>>, vector<1x32xf32>
    %cst = arith.constant dense<0.000000e+00> : vector<8xf32>
    %4 = vector.multi_reduction <add>, %1, %cst [1] : vector<8x32xf32> to vector<8xf32>
    %5 = vector.shape_cast %4 : vector<8xf32> to vector<8x1xf32>
    %cst_6 = arith.constant 3.200000e+01 : f32
    %6 = vector.broadcast %cst_6 : f32 to vector<8x1xf32>
    %7 = arith.divf %5, %6 : vector<8x1xf32>
    %8 = vector.broadcast %7 : vector<8x1xf32> to vector<8x32xf32>
    %9 = arith.subf %1, %8 : vector<8x32xf32>
    %10 = arith.mulf %9, %9 : vector<8x32xf32>
    %cst_7 = arith.constant dense<0.000000e+00> : vector<8xf32>
    %11 = vector.multi_reduction <add>, %10, %cst_7 [1] : vector<8x32xf32> to vector<8xf32>
    %12 = vector.shape_cast %11 : vector<8xf32> to vector<8x1xf32>
    %cst_8 = arith.constant 3.200000e+01 : f32
    %13 = vector.broadcast %cst_8 : f32 to vector<8x1xf32>
    %14 = arith.divf %12, %13 : vector<8x1xf32>
    %15 = vector.broadcast %7 : vector<8x1xf32> to vector<8x32xf32>
    %16 = arith.subf %1, %15 : vector<8x32xf32>
    %cst_9 = arith.constant 9.99999974E-6 : f32
    %17 = vector.broadcast %cst_9 : f32 to vector<8x1xf32>
    %18 = arith.addf %14, %17 : vector<8x1xf32>
    %19 = math.rsqrt %18 : vector<8x1xf32>
    %20 = vector.broadcast %19 : vector<8x1xf32> to vector<8x32xf32>
    %21 = arith.mulf %16, %20 : vector<8x32xf32>
    %22 = vector.broadcast %2 : vector<1x32xf32> to vector<8x32xf32>
    %23 = arith.mulf %21, %22 : vector<8x32xf32>
    %24 = vector.broadcast %3 : vector<1x32xf32> to vector<8x32xf32>
    %25 = arith.addf %23, %24 : vector<8x32xf32>
    %c0_10 = arith.constant 0 : index
    %c0_11 = arith.constant 0 : index
    %26 = vector.load %arg4[%c0_10, %c0_11] : memref<32x96xf32, #tpu.memory_space<vmem>>, vector<32x96xf32>
    %cst_12 = arith.constant dense<0.000000e+00> : vector<8x96xf32>
    %27 = tpu.matmul %25, %26, %cst_12 {dimension_numbers = #tpu.dot_dimension_numbers<[1], [0], [0], [1], [0, 0, 1, 1], [], []>} : vector<8x32xf32>, vector<32x96xf32>, vector<8x96xf32> -> vector<8x96xf32>
    %c0_13 = arith.constant 0 : index
    %c0_14 = arith.constant 0 : index
    %28 = vector.load %arg5[%c0_13, %c0_14] : memref<1x96xf32, #tpu.memory_space<vmem>>, vector<1x96xf32>
    %29 = vector.broadcast %28 : vector<1x96xf32> to vector<8x96xf32>
    %30 = arith.addf %27, %29 : vector<8x96xf32>
    %31 = vector.extract_strided_slice %30 {offsets = [0, 0], sizes = [8, 8], strides = [1, 1]} : vector<8x96xf32> to vector<8x8xf32>
    %32 = vector.extract_strided_slice %30 {offsets = [0, 32], sizes = [8, 8], strides = [1, 1]} : vector<8x96xf32> to vector<8x8xf32>
    %33 = vector.extract_strided_slice %30 {offsets = [0, 64], sizes = [8, 8], strides = [1, 1]} : vector<8x96xf32> to vector<8x8xf32>
    %cst_15 = arith.constant dense<0.000000e+00> : vector<8x8xf32>
    %34 = tpu.matmul %31, %32, %cst_15 {dimension_numbers = #tpu.dot_dimension_numbers<[1], [1], [0], [0], [0, 0, 1, 0], [], []>} : vector<8x8xf32>, vector<8x8xf32>, vector<8x8xf32> -> vector<8x8xf32>
    %cst_16 = arith.constant 0.353553385 : f32
    %35 = vector.broadcast %cst_16 : f32 to vector<8x8xf32>
    %36 = arith.mulf %34, %35 : vector<8x8xf32>
    %cst_17 = arith.constant dense<0xFF800000> : vector<8xf32>
    %37 = vector.multi_reduction <maximumf>, %36, %cst_17 [1] : vector<8x8xf32> to vector<8xf32>
    %38 = vector.shape_cast %37 : vector<8xf32> to vector<8x1xf32>
    %39 = vector.broadcast %38 : vector<8x1xf32> to vector<8x8xf32>
    %40 = arith.subf %36, %39 : vector<8x8xf32>
    %41 = math.exp %40 : vector<8x8xf32>
    %cst_18 = arith.constant dense<0.000000e+00> : vector<8xf32>
    %42 = vector.multi_reduction <add>, %41, %cst_18 [1] : vector<8x8xf32> to vector<8xf32>
    %43 = vector.shape_cast %42 : vector<8xf32> to vector<8x1xf32>
    %44 = tpu.reciprocal %43 : vector<8x1xf32> -> vector<8x1xf32>
    %45 = vector.broadcast %44 : vector<8x1xf32> to vector<8x8xf32>
    %46 = arith.mulf %41, %45 : vector<8x8xf32>
    %cst_19 = arith.constant dense<0.000000e+00> : vector<8x8xf32>
    %47 = tpu.matmul %46, %33, %cst_19 {dimension_numbers = #tpu.dot_dimension_numbers<[1], [0], [0], [1], [0, 0, 1, 1], [], []>} : vector<8x8xf32>, vector<8x8xf32>, vector<8x8xf32> -> vector<8x8xf32>
    %48 = vector.extract_strided_slice %25 {offsets = [0, 0], sizes = [8, 8], strides = [1, 1]} : vector<8x32xf32> to vector<8x8xf32>
    %49 = arith.addf %47, %48 : vector<8x8xf32>
    %c0_20 = arith.constant 0 : index
    %c0_21 = arith.constant 0 : index
    %c0_22 = arith.constant 0 : index
    %50 = vector.load %arg6[%c0_20, %c0_21, %c0_22] : memref<1x8x32xf32, #tpu.memory_space<vmem>>, vector<1x8x8xf32>
    %51 = vector.shape_cast %50 : vector<1x8x8xf32> to vector<8x8xf32>
    %52 = vector.shape_cast %49 : vector<8x8xf32> to vector<1x8x8xf32>
    tpu.vector_store %arg6[%c0_20, %c0_21, %c0_22], %52 {strides = array<i32>} : memref<1x8x32xf32, #tpu.memory_space<vmem>>, vector<1x8x8xf32>,
    %53 = vector.extract_strided_slice %30 {offsets = [0, 8], sizes = [8, 8], strides = [1, 1]} : vector<8x96xf32> to vector<8x8xf32>
    %54 = vector.extract_strided_slice %30 {offsets = [0, 40], sizes = [8, 8], strides = [1, 1]} : vector<8x96xf32> to vector<8x8xf32>
    %55 = vector.extract_strided_slice %30 {offsets = [0, 72], sizes = [8, 8], strides = [1, 1]} : vector<8x96xf32> to vector<8x8xf32>
    %cst_23 = arith.constant dense<0.000000e+00> : vector<8x8xf32>
    %56 = tpu.matmul %53, %54, %cst_23 {dimension_numbers = #tpu.dot_dimension_numbers<[1], [1], [0], [0], [0, 0, 1, 0], [], []>} : vector<8x8xf32>, vector<8x8xf32>, vector<8x8xf32> -> vector<8x8xf32>
    %cst_24 = arith.constant 0.353553385 : f32
    %57 = vector.broadcast %cst_24 : f32 to vector<8x8xf32>
    %58 = arith.mulf %56, %57 : vector<8x8xf32>
    %cst_25 = arith.constant dense<0xFF800000> : vector<8xf32>
    %59 = vector.multi_reduction <maximumf>, %58, %cst_25 [1] : vector<8x8xf32> to vector<8xf32>
    %60 = vector.shape_cast %59 : vector<8xf32> to vector<8x1xf32>
    %61 = vector.broadcast %60 : vector<8x1xf32> to vector<8x8xf32>
    %62 = arith.subf %58, %61 : vector<8x8xf32>
    %63 = math.exp %62 : vector<8x8xf32>
    %cst_26 = arith.constant dense<0.000000e+00> : vector<8xf32>
    %64 = vector.multi_reduction <add>, %63, %cst_26 [1] : vector<8x8xf32> to vector<8xf32>
    %65 = vector.shape_cast %64 : vector<8xf32> to vector<8x1xf32>
    %66 = tpu.reciprocal %65 : vector<8x1xf32> -> vector<8x1xf32>
    %67 = vector.broadcast %66 : vector<8x1xf32> to vector<8x8xf32>
    %68 = arith.mulf %63, %67 : vector<8x8xf32>
    %cst_27 = arith.constant dense<0.000000e+00> : vector<8x8xf32>
    %69 = tpu.matmul %68, %55, %cst_27 {dimension_numbers = #tpu.dot_dimension_numbers<[1], [0], [0], [1], [0, 0, 1, 1], [], []>} : vector<8x8xf32>, vector<8x8xf32>, vector<8x8xf32> -> vector<8x8xf32>
    %70 = vector.extract_strided_slice %25 {offsets = [0, 8], sizes = [8, 8], strides = [1, 1]} : vector<8x32xf32> to vector<8x8xf32>
    %71 = arith.addf %69, %70 : vector<8x8xf32>
    %c0_28 = arith.constant 0 : index
    %c0_29 = arith.constant 0 : index
    %c8 = arith.constant 8 : index
    %72 = vector.load %arg6[%c0_28, %c0_29, %c8] : memref<1x8x32xf32, #tpu.memory_space<vmem>>, vector<1x8x8xf32>
    %73 = vector.shape_cast %72 : vector<1x8x8xf32> to vector<8x8xf32>
    %74 = vector.shape_cast %71 : vector<8x8xf32> to vector<1x8x8xf32>
    tpu.vector_store %arg6[%c0_28, %c0_29, %c8], %74 {strides = array<i32>} : memref<1x8x32xf32, #tpu.memory_space<vmem>>, vector<1x8x8xf32>,
    %75 = vector.extract_strided_slice %30 {offsets = [0, 16], sizes = [8, 8], strides = [1, 1]} : vector<8x96xf32> to vector<8x8xf32>
    %76 = vector.extract_strided_slice %30 {offsets = [0, 48], sizes = [8, 8], strides = [1, 1]} : vector<8x96xf32> to vector<8x8xf32>
    %77 = vector.extract_strided_slice %30 {offsets = [0, 80], sizes = [8, 8], strides = [1, 1]} : vector<8x96xf32> to vector<8x8xf32>
    %cst_30 = arith.constant dense<0.000000e+00> : vector<8x8xf32>
    %78 = tpu.matmul %75, %76, %cst_30 {dimension_numbers = #tpu.dot_dimension_numbers<[1], [1], [0], [0], [0, 0, 1, 0], [], []>} : vector<8x8xf32>, vector<8x8xf32>, vector<8x8xf32> -> vector<8x8xf32>
    %cst_31 = arith.constant 0.353553385 : f32
    %79 = vector.broadcast %cst_31 : f32 to vector<8x8xf32>
    %80 = arith.mulf %78, %79 : vector<8x8xf32>
    %cst_32 = arith.constant dense<0xFF800000> : vector<8xf32>
    %81 = vector.multi_reduction <maximumf>, %80, %cst_32 [1] : vector<8x8xf32> to vector<8xf32>
    %82 = vector.shape_cast %81 : vector<8xf32> to vector<8x1xf32>
    %83 = vector.broadcast %82 : vector<8x1xf32> to vector<8x8xf32>
    %84 = arith.subf %80, %83 : vector<8x8xf32>
    %85 = math.exp %84 : vector<8x8xf32>
    %cst_33 = arith.constant dense<0.000000e+00> : vector<8xf32>
    %86 = vector.multi_reduction <add>, %85, %cst_33 [1] : vector<8x8xf32> to vector<8xf32>
    %87 = vector.shape_cast %86 : vector<8xf32> to vector<8x1xf32>
    %88 = tpu.reciprocal %87 : vector<8x1xf32> -> vector<8x1xf32>
    %89 = vector.broadcast %88 : vector<8x1xf32> to vector<8x8xf32>
    %90 = arith.mulf %85, %89 : vector<8x8xf32>
    %cst_34 = arith.constant dense<0.000000e+00> : vector<8x8xf32>
    %91 = tpu.matmul %90, %77, %cst_34 {dimension_numbers = #tpu.dot_dimension_numbers<[1], [0], [0], [1], [0, 0, 1, 1], [], []>} : vector<8x8xf32>, vector<8x8xf32>, vector<8x8xf32> -> vector<8x8xf32>
    %92 = vector.extract_strided_slice %25 {offsets = [0, 16], sizes = [8, 8], strides = [1, 1]} : vector<8x32xf32> to vector<8x8xf32>
    %93 = arith.addf %91, %92 : vector<8x8xf32>
    %c0_35 = arith.constant 0 : index
    %c0_36 = arith.constant 0 : index
    %c16 = arith.constant 16 : index
    %94 = vector.load %arg6[%c0_35, %c0_36, %c16] : memref<1x8x32xf32, #tpu.memory_space<vmem>>, vector<1x8x8xf32>
    %95 = vector.shape_cast %94 : vector<1x8x8xf32> to vector<8x8xf32>
    %96 = vector.shape_cast %93 : vector<8x8xf32> to vector<1x8x8xf32>
    tpu.vector_store %arg6[%c0_35, %c0_36, %c16], %96 {strides = array<i32>} : memref<1x8x32xf32, #tpu.memory_space<vmem>>, vector<1x8x8xf32>,
    %97 = vector.extract_strided_slice %30 {offsets = [0, 24], sizes = [8, 8], strides = [1, 1]} : vector<8x96xf32> to vector<8x8xf32>
    %98 = vector.extract_strided_slice %30 {offsets = [0, 56], sizes = [8, 8], strides = [1, 1]} : vector<8x96xf32> to vector<8x8xf32>
    %99 = vector.extract_strided_slice %30 {offsets = [0, 88], sizes = [8, 8], strides = [1, 1]} : vector<8x96xf32> to vector<8x8xf32>
    %cst_37 = arith.constant dense<0.000000e+00> : vector<8x8xf32>
    %100 = tpu.matmul %97, %98, %cst_37 {dimension_numbers = #tpu.dot_dimension_numbers<[1], [1], [0], [0], [0, 0, 1, 0], [], []>} : vector<8x8xf32>, vector<8x8xf32>, vector<8x8xf32> -> vector<8x8xf32>
    %cst_38 = arith.constant 0.353553385 : f32
    %101 = vector.broadcast %cst_38 : f32 to vector<8x8xf32>
    %102 = arith.mulf %100, %101 : vector<8x8xf32>
    %cst_39 = arith.constant dense<0xFF800000> : vector<8xf32>
    %103 = vector.multi_reduction <maximumf>, %102, %cst_39 [1] : vector<8x8xf32> to vector<8xf32>
    %104 = vector.shape_cast %103 : vector<8xf32> to vector<8x1xf32>
    %105 = vector.broadcast %104 : vector<8x1xf32> to vector<8x8xf32>
    %106 = arith.subf %102, %105 : vector<8x8xf32>
    %107 = math.exp %106 : vector<8x8xf32>
    %cst_40 = arith.constant dense<0.000000e+00> : vector<8xf32>
    %108 = vector.multi_reduction <add>, %107, %cst_40 [1] : vector<8x8xf32> to vector<8xf32>
    %109 = vector.shape_cast %108 : vector<8xf32> to vector<8x1xf32>
    %110 = tpu.reciprocal %109 : vector<8x1xf32> -> vector<8x1xf32>
    %111 = vector.broadcast %110 : vector<8x1xf32> to vector<8x8xf32>
    %112 = arith.mulf %107, %111 : vector<8x8xf32>
    %cst_41 = arith.constant dense<0.000000e+00> : vector<8x8xf32>
    %113 = tpu.matmul %112, %99, %cst_41 {dimension_numbers = #tpu.dot_dimension_numbers<[1], [0], [0], [1], [0, 0, 1, 1], [], []>} : vector<8x8xf32>, vector<8x8xf32>, vector<8x8xf32> -> vector<8x8xf32>
    %114 = vector.extract_strided_slice %25 {offsets = [0, 24], sizes = [8, 8], strides = [1, 1]} : vector<8x32xf32> to vector<8x8xf32>
    %115 = arith.addf %113, %114 : vector<8x8xf32>
    %c0_42 = arith.constant 0 : index
    %c0_43 = arith.constant 0 : index
    %c24 = arith.constant 24 : index
    %116 = vector.load %arg6[%c0_42, %c0_43, %c24] : memref<1x8x32xf32, #tpu.memory_space<vmem>>, vector<1x8x8xf32>
    %117 = vector.shape_cast %116 : vector<1x8x8xf32> to vector<8x8xf32>
    %118 = vector.shape_cast %115 : vector<8x8xf32> to vector<1x8x8xf32>
    tpu.vector_store %arg6[%c0_42, %c0_43, %c24], %118 {strides = array<i32>} : memref<1x8x32xf32, #tpu.memory_space<vmem>>, vector<1x8x8xf32>,
    return
  }
  func.func @transform_0(%arg0: i32) -> (i32, i32, i32) {
    %c0_i32 = arith.constant 0 : i32
    %c0_i32_0 = arith.constant 0 : i32
    %c0_i32_1 = arith.constant 0 : i32
    return %arg0, %c0_i32, %c0_i32_0 : i32, i32, i32
  }
  func.func @transform_1(%arg0: i32) -> (i32, i32) {
    %c0_i32 = arith.constant 0 : i32
    %c0_i32_0 = arith.constant 0 : i32
    %c0_i32_1 = arith.constant 0 : i32
    return %c0_i32, %c0_i32_0 : i32, i32
  }
  func.func @transform_2(%arg0: i32) -> (i32, i32) {
    %c0_i32 = arith.constant 0 : i32
    %c0_i32_0 = arith.constant 0 : i32
    %c0_i32_1 = arith.constant 0 : i32
    return %c0_i32, %c0_i32_0 : i32, i32
  }
  func.func @transform_3(%arg0: i32) -> (i32, i32) {
    %c0_i32 = arith.constant 0 : i32
    %c0_i32_0 = arith.constant 0 : i32
    %c0_i32_1 = arith.constant 0 : i32
    return %c0_i32, %c0_i32_0 : i32, i32
  }
  func.func @transform_4(%arg0: i32) -> (i32, i32) {
    %c0_i32 = arith.constant 0 : i32
    %c0_i32_0 = arith.constant 0 : i32
    %c0_i32_1 = arith.constant 0 : i32
    return %c0_i32, %c0_i32_0 : i32, i32
  }
  func.func @transform_5(%arg0: i32) -> (i32, i32, i32) {
    %c0_i32 = arith.constant 0 : i32
    %c0_i32_0 = arith.constant 0 : i32
    %c0_i32_1 = arith.constant 0 : i32
    return %arg0, %c0_i32, %c0_i32_0 : i32, i32, i32
  }
}

module attributes {stable_mosaic.version = 11 : i64} {
  func.func @_ln_mlp_kernel(%arg0: i32, %arg1: memref<16x32xf32, #tpu.memory_space<vmem>>, %arg2: memref<1x32xf32, #tpu.memory_space<vmem>>, %arg3: memref<1x32xf32, #tpu.memory_space<vmem>>, %arg4: memref<32x32xf32, #tpu.memory_space<vmem>>, %arg5: memref<1x32xf32, #tpu.memory_space<vmem>>, %arg6: memref<32x32xf32, #tpu.memory_space<vmem>>, %arg7: memref<1x32xf32, #tpu.memory_space<vmem>>, %arg8: memref<16x32xf32, #tpu.memory_space<vmem>>) attributes {dimension_semantics = [#tpu.dimension_semantics<parallel>], iteration_bounds = array<i64: 1>, scalar_prefetch = 0 : i64, scratch_operands = 0 : i64, tpu.core_type = #tpu.core_type<tc>, window_params = [{transform_indices = @transform_0, window_bounds = array<i64: 16, 32>}, {pipeline_mode = #tpu.pipeline_mode<synchronous>, transform_indices = @transform_1, window_bounds = array<i64: 1, 32>}, {pipeline_mode = #tpu.pipeline_mode<synchronous>, transform_indices = @transform_2, window_bounds = array<i64: 1, 32>}, {pipeline_mode = #tpu.pipeline_mode<synchronous>, transform_indices = @transform_3, window_bounds = array<i64: 32, 32>}, {pipeline_mode = #tpu.pipeline_mode<synchronous>, transform_indices = @transform_4, window_bounds = array<i64: 1, 32>}, {pipeline_mode = #tpu.pipeline_mode<synchronous>, transform_indices = @transform_5, window_bounds = array<i64: 32, 32>}, {pipeline_mode = #tpu.pipeline_mode<synchronous>, transform_indices = @transform_6, window_bounds = array<i64: 1, 32>}, {transform_indices = @transform_7, window_bounds = array<i64: 16, 32>}]} {
    %c0 = arith.constant 0 : index
    %c0_0 = arith.constant 0 : index
    %0 = vector.load %arg1[%c0, %c0_0] : memref<16x32xf32, #tpu.memory_space<vmem>>, vector<16x32xf32>
    %c0_1 = arith.constant 0 : index
    %c0_2 = arith.constant 0 : index
    %1 = vector.load %arg2[%c0_1, %c0_2] : memref<1x32xf32, #tpu.memory_space<vmem>>, vector<1x32xf32>
    %c0_3 = arith.constant 0 : index
    %c0_4 = arith.constant 0 : index
    %2 = vector.load %arg3[%c0_3, %c0_4] : memref<1x32xf32, #tpu.memory_space<vmem>>, vector<1x32xf32>
    %cst = arith.constant dense<0.000000e+00> : vector<16xf32>
    %3 = vector.multi_reduction <add>, %0, %cst [1] : vector<16x32xf32> to vector<16xf32>
    %4 = vector.shape_cast %3 : vector<16xf32> to vector<16x1xf32>
    %cst_5 = arith.constant 3.200000e+01 : f32
    %5 = vector.broadcast %cst_5 : f32 to vector<16x1xf32>
    %6 = arith.divf %4, %5 : vector<16x1xf32>
    %7 = vector.broadcast %6 : vector<16x1xf32> to vector<16x32xf32>
    %8 = arith.subf %0, %7 : vector<16x32xf32>
    %9 = arith.mulf %8, %8 : vector<16x32xf32>
    %cst_6 = arith.constant dense<0.000000e+00> : vector<16xf32>
    %10 = vector.multi_reduction <add>, %9, %cst_6 [1] : vector<16x32xf32> to vector<16xf32>
    %11 = vector.shape_cast %10 : vector<16xf32> to vector<16x1xf32>
    %cst_7 = arith.constant 3.200000e+01 : f32
    %12 = vector.broadcast %cst_7 : f32 to vector<16x1xf32>
    %13 = arith.divf %11, %12 : vector<16x1xf32>
    %14 = vector.broadcast %6 : vector<16x1xf32> to vector<16x32xf32>
    %15 = arith.subf %0, %14 : vector<16x32xf32>
    %cst_8 = arith.constant 9.99999974E-6 : f32
    %16 = vector.broadcast %cst_8 : f32 to vector<16x1xf32>
    %17 = arith.addf %13, %16 : vector<16x1xf32>
    %18 = math.rsqrt %17 : vector<16x1xf32>
    %19 = vector.broadcast %18 : vector<16x1xf32> to vector<16x32xf32>
    %20 = arith.mulf %15, %19 : vector<16x32xf32>
    %21 = vector.broadcast %1 : vector<1x32xf32> to vector<16x32xf32>
    %22 = arith.mulf %20, %21 : vector<16x32xf32>
    %23 = vector.broadcast %2 : vector<1x32xf32> to vector<16x32xf32>
    %24 = arith.addf %22, %23 : vector<16x32xf32>
    %c0_9 = arith.constant 0 : index
    %c0_10 = arith.constant 0 : index
    %25 = vector.load %arg4[%c0_9, %c0_10] : memref<32x32xf32, #tpu.memory_space<vmem>>, vector<32x32xf32>
    %cst_11 = arith.constant dense<0.000000e+00> : vector<16x32xf32>
    %26 = tpu.matmul %24, %25, %cst_11 {dimension_numbers = #tpu.dot_dimension_numbers<[1], [0], [0], [1], [0, 0, 1, 1], [], []>} : vector<16x32xf32>, vector<32x32xf32>, vector<16x32xf32> -> vector<16x32xf32>
    %c0_12 = arith.constant 0 : index
    %c0_13 = arith.constant 0 : index
    %27 = vector.load %arg5[%c0_12, %c0_13] : memref<1x32xf32, #tpu.memory_space<vmem>>, vector<1x32xf32>
    %28 = vector.broadcast %27 : vector<1x32xf32> to vector<16x32xf32>
    %29 = arith.addf %26, %28 : vector<16x32xf32>
    %cst_14 = arith.constant 5.000000e-01 : f32
    %30 = vector.broadcast %cst_14 : f32 to vector<16x32xf32>
    %31 = arith.mulf %30, %29 : vector<16x32xf32>
    %32 = arith.mulf %29, %29 : vector<16x32xf32>
    %33 = arith.mulf %32, %29 : vector<16x32xf32>
    %cst_15 = arith.constant 4.471500e-02 : f32
    %34 = vector.broadcast %cst_15 : f32 to vector<16x32xf32>
    %35 = arith.mulf %34, %33 : vector<16x32xf32>
    %36 = arith.addf %29, %35 : vector<16x32xf32>
    %cst_16 = arith.constant 0.797884583 : f32
    %37 = vector.broadcast %cst_16 : f32 to vector<16x32xf32>
    %38 = arith.mulf %37, %36 : vector<16x32xf32>
    %39 = math.tanh %38 : vector<16x32xf32>
    %cst_17 = arith.constant 1.000000e+00 : f32
    %40 = vector.broadcast %cst_17 : f32 to vector<16x32xf32>
    %41 = arith.addf %40, %39 : vector<16x32xf32>
    %42 = arith.mulf %31, %41 : vector<16x32xf32>
    %c0_18 = arith.constant 0 : index
    %c0_19 = arith.constant 0 : index
    %43 = vector.load %arg6[%c0_18, %c0_19] : memref<32x32xf32, #tpu.memory_space<vmem>>, vector<32x32xf32>
    %cst_20 = arith.constant dense<0.000000e+00> : vector<16x32xf32>
    %44 = tpu.matmul %42, %43, %cst_20 {dimension_numbers = #tpu.dot_dimension_numbers<[1], [0], [0], [1], [0, 0, 1, 1], [], []>} : vector<16x32xf32>, vector<32x32xf32>, vector<16x32xf32> -> vector<16x32xf32>
    %45 = arith.addf %0, %44 : vector<16x32xf32>
    %c0_21 = arith.constant 0 : index
    %c0_22 = arith.constant 0 : index
    %46 = vector.load %arg7[%c0_21, %c0_22] : memref<1x32xf32, #tpu.memory_space<vmem>>, vector<1x32xf32>
    %47 = vector.broadcast %46 : vector<1x32xf32> to vector<16x32xf32>
    %48 = arith.addf %45, %47 : vector<16x32xf32>
    %c0_23 = arith.constant 0 : index
    %c0_24 = arith.constant 0 : index
    %49 = vector.load %arg8[%c0_23, %c0_24] : memref<16x32xf32, #tpu.memory_space<vmem>>, vector<16x32xf32>
    tpu.vector_store %arg8[%c0_23, %c0_24], %48 {strides = array<i32>} : memref<16x32xf32, #tpu.memory_space<vmem>>, vector<16x32xf32>,
    return
  }
  func.func @transform_0(%arg0: i32) -> (i32, i32) {
    %c0_i32 = arith.constant 0 : i32
    %c0_i32_0 = arith.constant 0 : i32
    return %arg0, %c0_i32 : i32, i32
  }
  func.func @transform_1(%arg0: i32) -> (i32, i32) {
    %c0_i32 = arith.constant 0 : i32
    %c0_i32_0 = arith.constant 0 : i32
    %c0_i32_1 = arith.constant 0 : i32
    return %c0_i32, %c0_i32_0 : i32, i32
  }
  func.func @transform_2(%arg0: i32) -> (i32, i32) {
    %c0_i32 = arith.constant 0 : i32
    %c0_i32_0 = arith.constant 0 : i32
    %c0_i32_1 = arith.constant 0 : i32
    return %c0_i32, %c0_i32_0 : i32, i32
  }
  func.func @transform_3(%arg0: i32) -> (i32, i32) {
    %c0_i32 = arith.constant 0 : i32
    %c0_i32_0 = arith.constant 0 : i32
    %c0_i32_1 = arith.constant 0 : i32
    return %c0_i32, %c0_i32_0 : i32, i32
  }
  func.func @transform_4(%arg0: i32) -> (i32, i32) {
    %c0_i32 = arith.constant 0 : i32
    %c0_i32_0 = arith.constant 0 : i32
    %c0_i32_1 = arith.constant 0 : i32
    return %c0_i32, %c0_i32_0 : i32, i32
  }
  func.func @transform_5(%arg0: i32) -> (i32, i32) {
    %c0_i32 = arith.constant 0 : i32
    %c0_i32_0 = arith.constant 0 : i32
    %c0_i32_1 = arith.constant 0 : i32
    return %c0_i32, %c0_i32_0 : i32, i32
  }
  func.func @transform_6(%arg0: i32) -> (i32, i32) {
    %c0_i32 = arith.constant 0 : i32
    %c0_i32_0 = arith.constant 0 : i32
    %c0_i32_1 = arith.constant 0 : i32
    return %c0_i32, %c0_i32_0 : i32, i32
  }
  func.func @transform_7(%arg0: i32) -> (i32, i32) {
    %c0_i32 = arith.constant 0 : i32
    %c0_i32_0 = arith.constant 0 : i32
    return %arg0, %c0_i32 : i32, i32
  }
}

</mosaic_0001>

<llo_original>
// kernel: vit_block.3
$region0: #{vit_block.3}
  #allocation0 [shape = 'u32[]', space=smem, size = 0x4, offset = 0x4, fixed_abs, tag = 'smem constant byte address 0x4 - core index']
  #allocation1 [shape = 'u32[72,128]{1,0:T(1,128)}', space=vmem, size = 0x9000, scoped, tag = 'internal scratch']
  %s0 = inlined_call_operand.vmem [shape: f32[16,32], index: 0, kind: input, shape index: {}]
  %s1 = inlined_call_operand.vmem [shape: f32[1,32], index: 1, kind: input, shape index: {}]
  %s2 = inlined_call_operand.vmem [shape: f32[1,32], index: 2, kind: input, shape index: {}]
  %s3 = inlined_call_operand.vmem [shape: f32[32,32], index: 3, kind: input, shape index: {}]
  %s4 = inlined_call_operand.vmem [shape: f32[1,32], index: 4, kind: input, shape index: {}]
  %s5 = inlined_call_operand.hbm [shape: f32[32,32], index: 5, kind: input, shape index: {}]
  %s6 = inlined_call_operand.vmem [shape: f32[1,32], index: 6, kind: input, shape index: {}]
  %s7 = inlined_call_operand.hbm [shape: f32[16,32], index: 7, kind: output, shape index: {}]
  %s8 = sld [smem:[#allocation0]]
  $region42: #{vit_block.3} parent=0
    _
  %s10 = ssub.s32 1, %s8
  %s11 = scalar_select 0, %s10, %s8
  $region1: #{vit_block.3} parent=0
    #allocation2 [shape = 'u8[16384]{0}', space=vmem, size = 0x4000, scoped, tag = 'input window, operand 5, single buffered']
    #allocation3 [shape = 's32[1]{0}', space=sflag, size = 0x4, scoped, tag = 'scoped memory for vit_block.3']
    #allocation4 [shape = 's32[1]{0}', space=sflag, size = 0x4, scoped, tag = 'scoped memory for vit_block.3']
    #allocation5 [shape = 'u8[8192]{0}', space=vmem, size = 0x2000, scoped, tag = 'output window, operand 0, single buffered']
    %12 = vsyncpa [#allocation3], 0
    %13 = vsyncpa [#allocation4], 0
    // Predicated region
    $region2: #{vit_block.3} parent=1 // pred_check
      _
    $region3: #{vit_block.3} parent=1 // pred_check_branch
      %15 = sbr.rel (0) target = $region5
    $region4: #{vit_block.3} parent=1 // pred_region
      _
    $region5: #{vit_block.3} parent=1 // pred_fallthru
      _
    // Predicated region
    $region6: #{vit_block.3} parent=1 // pred_check
      _
    $region7: #{vit_block.3} parent=1 // pred_check_branch
      %17 = sbr.rel (0) target = $region9
    $region8: #{vit_block.3} parent=1 // pred_region
      _
    $region9: #{vit_block.3} parent=1 // pred_fallthru
      _
    // Predicated region
    $region10: #{vit_block.3} parent=1 // pred_check
      _
    $region11: #{vit_block.3} parent=1 // pred_check_branch
      %19 = sbr.rel (0) target = $region13
    $region12: #{vit_block.3} parent=1 // pred_region
      _
    $region13: #{vit_block.3} parent=1 // pred_fallthru
      _
    // Predicated region
    $region14: #{vit_block.3} parent=1 // pred_check
      _
    $region15: #{vit_block.3} parent=1 // pred_check_branch
      %21 = sbr.rel (0) target = $region17
    $region16: #{vit_block.3} parent=1 // pred_region
      _
    $region17: #{vit_block.3} parent=1 // pred_fallthru
      _
    // Predicated region
    $region18: #{vit_block.3} parent=1 // pred_check
      _
    $region19: #{vit_block.3} parent=1 // pred_check_branch
      %23 = sbr.rel (0) target = $region21
    $region20: #{vit_block.3} parent=1 // pred_region
      _
    $region21: #{vit_block.3} parent=1 // pred_fallthru
      _
    // Predicated region
    $region22: #{vit_block.3} parent=1 // pred_check
      _
    $region23: #{vit_block.3} parent=1 // pred_check_branch
      %25 = sbr.rel (0) target = $region25
    $region24: #{vit_block.3} parent=1 // pred_region
      %27 = vsyncadd [#allocation3], 0
      %s28 = sshll.u32 %s5, 4
      %s29 = int_to_ptr.hbm [resolvable:$true] %s28
      %s30 = sshll.u32 [#allocation2], 4
      %s31 = int_to_ptr.vmem [resolvable:$true] %s30
      %36 = dma.hbm_to_vmem [thread:$0]  %s29, 512, %s31, [#allocation3], 128, 128, 8
    $region25: #{vit_block.3} parent=1 // pred_fallthru
      _
    // Predicated region
    $region26: #{vit_block.3} parent=1 // pred_check
      _
    $region27: #{vit_block.3} parent=1 // pred_check_branch
      %38 = sbr.rel (0) target = $region29
    $region28: #{vit_block.3} parent=1 // pred_region
      _
    $region29: #{vit_block.3} parent=1 // pred_fallthru
      _
    // Predicated region
    $region30: #{vit_block.3} parent=1 // pred_check
      _
    $region31: #{vit_block.3} parent=1 // pred_check_branch
      %40 = sbr.rel (0) target = $region33
    $region32: #{vit_block.3} parent=1 // pred_region
      %42 = dma.done [#allocation3], 512
    $region33: #{vit_block.3} parent=1 // pred_fallthru
      _
    %v43 = vld [vmem:[%s0] sm:$0xff]
    %v44 = vld [vmem:[%s0 + $0x8] sm:$0xff]
    %v45 = vld [vmem:[%s1] sm:$0x1]
    %v46 = vld [vmem:[%s2] sm:$0x1]
    %vm47 = vcmask 261120
    %v48 = vsel %vm47, %v43, 0.0
    %49 = vadd.xlane.f32.xlu0 %v48
    %v50 = vpop.xlane.xlu0 %49
    %v51 = vsel %vm47, %v44, 0.0
    %52 = vadd.xlane.f32.xlu0 %v51
    %v53 = vpop.xlane.xlu0 %52
    %v54 = vrcp.pop 32.0
    %v55 = vmul.f32 32.0, %v54
    %v56 = vsub.f32 1.0, %v55
    %v57 = vmul.f32 %v54, %v56
    %v58 = vadd.f32 %v54, %v57
    %vm59 = vweird.f32 %v54
    %v60 = vsel %vm59, %v54, %v58
    %v61 = vmul.f32 %v50, %v60
    %v62 = vmul.f32 %v53, %v60
    %v63 = vsub.f32 %v43, %v61
    %v64 = vsub.f32 %v44, %v62
    %v65 = vmul.f32 %v63, %v63
    %v66 = vmul.f32 %v64, %v64
    %v67 = vsel %vm47, %v65, 0.0
    %68 = vadd.xlane.f32.xlu0 %v67
    %v69 = vpop.xlane.xlu0 %68
    %v70 = vsel %vm47, %v66, 0.0
    %71 = vadd.xlane.f32.xlu0 %v70
    %v72 = vpop.xlane.xlu0 %71
    %v73 = vmul.f32 %v69, %v60
    %v74 = vmul.f32 %v72, %v60
    %v75 = vadd.f32 %v73, 1e-05
    %v76 = vadd.f32 %v74, 1e-05
    %v77 = vrsqrt.pop %v75
    %v78 = vmul.f32 %v77, %v75
    %v79 = vmul.f32 %v78, %v77
    %v80 = vmul.f32 0.5, %v79
    %v81 = vsub.f32 1.5, %v80
    %v82 = vmul.f32 %v77, %v81
    %vm83 = vweird.f32 %v75
    %vm84 = vweird.f32 %v77
    %vm85 = vmor %vm83, %vm84
    %v86 = vsel %vm85, %v77, %v82
    %v87 = vrsqrt.pop %v76
    %v88 = vmul.f32 %v87, %v76
    %v89 = vmul.f32 %v88, %v87
    %v90 = vmul.f32 0.5, %v89
    %v91 = vsub.f32 1.5, %v90
    %v92 = vmul.f32 %v87, %v91
    %vm93 = vweird.f32 %v76
    %vm94 = vweird.f32 %v87
    %vm95 = vmor %vm93, %vm94
    %v96 = vsel %vm95, %v87, %v92
    %v97 = vmul.f32 %v63, %v86
    %v98 = vmul.f32 %v64, %v96
    %v100 = vperm.slane %v45, 0
    %v102 = vmul.f32 %v97, %v100
    %v103 = vmul.f32 %v98, %v100
    %v105 = vperm.slane %v46, 0
    %v107 = vadd.f32 %v102, %v105
    %v108 = vadd.f32 %v103, %v105
    %v109 = vld [vmem:[%s3] sm:$0xff]
    %v110 = vld [vmem:[%s3 + $0x8] sm:$0xff]
    %v111 = vld [vmem:[%s3 + $0x10] sm:$0xff]
    %v112 = vld [vmem:[%s3 + $0x18] sm:$0xff]
    %v113 = vld [vmem:[%s4] sm:$0x1]
    %v115 = vperm.slane %v113, 0
    %v118 = vsel %vm47, %v107, 0
    %v121 = vsel %vm47, %v108, 0
    %123 = vmatpush.msra.mxu0 0.0
    %124 = vmatpush.msra.mxu0 0.0
    %125 = vmatpush.msra.mxu0 0.0
    %126 = vmatpush.msra.mxu0 0.0
    %127 = vmatpush.msra.mxu0 0.0
    %128 = vmatpush.msra.mxu0 0.0
    %129 = vmatpush.msra.mxu0 0.0
    %130 = vmatpush.msra.mxu0 0.0
    %131 = vmatpush.msra.mxu0 0.0
    %132 = vmatpush.msra.mxu0 0.0
    %133 = vmatpush.msra.mxu0 0.0
    %134 = vmatpush.msra.mxu0 0.0
    %135 = vmatpush.msra.mxu0 %v112
    %136 = vmatpush.msra.mxu0 %v111
    %137 = vmatpush.msra.mxu0 %v110
    %138 = vmatpush.msra.mxu0 %v109
    %139 = vmatmul.f32.gmra.mxu0 %v118
    %v140 = vpop.f32.mrf.mxu0
    %v141 = vadd.f32 %v115, %v140
    %142 = vmatmul.f32.gmra.mxu0 %v121
    %v143 = vpop.f32.mrf.mxu0
    %v144 = vadd.f32 %v115, %v143
    %145 = vdwg.mxu0
    %v146 = vmul.f32 %v141, 0.5
    %v147 = vmul.f32 %v144, 0.5
    %v148 = vmul.f32 %v141, %v141
    %v149 = vmul.f32 %v144, %v144
    %v150 = vmul.f32 %v148, %v141
    %v151 = vmul.f32 %v149, %v144
    %v152 = vmul.f32 %v150, 0.044715
    %v153 = vmul.f32 %v151, 0.044715
    %v154 = vadd.f32 %v141, %v152
    %v155 = vadd.f32 %v144, %v153
    %v156 = vmul.f32 %v154, 0.7978846
    %v157 = vmul.f32 %v155, 0.7978846
    %v158 = vtanh.pop %v156
    %v159 = vtanh.pop %v157
    %v160 = vadd.f32 %v158, 1.0
    %v161 = vadd.f32 %v159, 1.0
    %v162 = vmul.f32 %v146, %v160
    %v163 = vmul.f32 %v147, %v161
    %v164 = vld [vmem:[#allocation2] sm:$0xff]
    %v165 = vld [vmem:[#allocation2 + $0x8] sm:$0xff]
    %v166 = vld [vmem:[#allocation2 + $0x10] sm:$0xff]
    %v167 = vld [vmem:[#allocation2 + $0x18] sm:$0xff]
    %v169 = vsel %vm47, %v162, 0
    %v172 = vsel %vm47, %v163, 0
    %174 = vmatpush.msra.mxu0 0.0
    %175 = vmatpush.msra.mxu0 0.0
    %176 = vmatpush.msra.mxu0 0.0
    %177 = vmatpush.msra.mxu0 0.0
    %178 = vmatpush.msra.mxu0 0.0
    %179 = vmatpush.msra.mxu0 0.0
    %180 = vmatpush.msra.mxu0 0.0
    %181 = vmatpush.msra.mxu0 0.0
    %182 = vmatpush.msra.mxu0 0.0
    %183 = vmatpush.msra.mxu0 0.0
    %184 = vmatpush.msra.mxu0 0.0
    %185 = vmatpush.msra.mxu0 0.0
    %186 = vmatpush.msra.mxu0 %v167
    %187 = vmatpush.msra.mxu0 %v166
    %188 = vmatpush.msra.mxu0 %v165
    %189 = vmatpush.msra.mxu0 %v164
    %190 = vmatmul.f32.gmra.mxu0 %v169
    %v191 = vpop.f32.mrf.mxu0
    %v192 = vadd.f32 0.0, %v191
    %193 = vmatmul.f32.gmra.mxu0 %v172
    %v194 = vpop.f32.mrf.mxu0
    %v195 = vadd.f32 0.0, %v194
    %196 = vdwg.mxu0
    %v197 = vadd.f32 %v43, %v192
    %v198 = vadd.f32 %v44, %v195
    %v199 = vld [vmem:[%s6] sm:$0x1]
    %v201 = vperm.slane %v199, 0
    %v203 = vadd.f32 %v197, %v201
    %v204 = vadd.f32 %v198, %v201
    %205 = vst.msk [vmem:[#allocation5] sm:$0xff] %vm47, %v203
    %206 = vst.msk [vmem:[#allocation5 + $0x8] sm:$0xff] %vm47, %v204
    // Predicated region
    $region34: #{vit_block.3} parent=1 // pred_check
      _
    $region35: #{vit_block.3} parent=1 // pred_check_branch
      %208 = sbr.rel (0) target = $region37
    $region36: #{vit_block.3} parent=1 // pred_region
      %210 = vsyncadd [#allocation4], 0
      %s211 = sshll.u32 [#allocation5], 4
      %s212 = int_to_ptr.vmem [resolvable:$true] %s211
      %s213 = sshll.u32 %s7, 4
      %s214 = int_to_ptr.hbm [resolvable:$true] %s213
      %219 = dma.vmem_to_hbm [thread:$0]  %s212, 256, %s214, [#allocation4], 128, 128, 8
    $region37: #{vit_block.3} parent=1 // pred_fallthru
      _
    // Predicated region
    $region38: #{vit_block.3} parent=1 // pred_check
      _
    $region39: #{vit_block.3} parent=1 // pred_check_branch
      %221 = sbr.rel (0) target = $region41
    $region40: #{vit_block.3} parent=1 // pred_region
      %223 = dma.done [#allocation4], 256
    $region41: #{vit_block.3} parent=1 // pred_fallthru
      _
    %224 = vsyncpa [#allocation3], 1
    %225 = vsyncpa [#allocation4], 1

// kernel: vit_block.2
$region0: #{vit_block.2}
  #allocation0 [shape = 'u32[]', space=smem, size = 0x4, offset = 0x4, fixed_abs, tag = 'smem constant byte address 0x4 - core index']
  #allocation1 [shape = 'u32[72,128]{1,0:T(1,128)}', space=vmem, size = 0x9000, scoped, tag = 'internal scratch']
  %s0 = inlined_call_operand.hbm [shape: f32[2,8,32], index: 0, kind: input, shape index: {}]
  %s1 = inlined_call_operand.hbm [shape: f32[1,32], index: 1, kind: input, shape index: {}]
  %s2 = inlined_call_operand.hbm [shape: f32[1,32], index: 2, kind: input, shape index: {}]
  %s3 = inlined_call_operand.hbm [shape: f32[32,96], index: 3, kind: input, shape index: {}]
  %s4 = inlined_call_operand.hbm [shape: f32[1,96], index: 4, kind: input, shape index: {}]
  %s5 = inlined_call_operand.vmem [shape: f32[2,8,32], index: 5, kind: output, shape index: {}]
  %s6 = sld [smem:[#allocation0]]
  $region73: #{vit_block.2} parent=0
    _
  %s8 = ssub.s32 1, %s6
  %s9 = scalar_select 0, %s8, %s6
  $region1: #{vit_block.2} parent=0
    #allocation2 [shape = 'u8[8192]{0}', space=vmem, size = 0x2000, scoped, tag = 'input window, operand 0']
    #allocation3 [shape = 's32[2]{0}', space=sflag, size = 0x8, scoped, tag = 'scoped memory for vit_block.2']
    #allocation4 [shape = 'u8[512]{0}', space=vmem, size = 0x400, scoped, tag = 'input window, operand 1, single buffered']
    #allocation5 [shape = 's32[1]{0}', space=sflag, size = 0x4, scoped, tag = 'scoped memory for vit_block.2']
    #allocation6 [shape = 'u8[512]{0}', space=vmem, size = 0x400, scoped, tag = 'input window, operand 2, single buffered']
    #allocation7 [shape = 'u8[16384]{0}', space=vmem, size = 0x4000, scoped, tag = 'input window, operand 3, single buffered']
    #allocation8 [shape = 's32[1]{0}', space=sflag, size = 0x4, scoped, tag = 'scoped memory for vit_block.2']
    #allocation9 [shape = 'u8[512]{0}', space=vmem, size = 0x400, scoped, tag = 'input window, operand 4, single buffered']
    %10 = vsyncpa [#allocation3], 0
    %s11 = scalar_lea.sflag [#allocation3], 1
    %12 = vsyncpa %s11, 0
    %13 = vsyncpa [#allocation5], 0
    %14 = vsyncpa [#allocation8], 0
    loop: start=0, step=1, limit=4
    $region2: #{vit_block.2} parent=1 // loop_pre_header
      _
    $region3: #{vit_block.2} parent=1 // loop_header
      %s16 = sphi 0, %s20
      %p17 = scmp.ge.s32.totalorder %s16, 4
      %s26 = sphi 0, %s28
      %s29 = sphi 0, %s26
      %s30 = sphi 0, %s29
      %s46 = sphi 0, %s30
      %s50 = sphi 0, %s50
      %s52 = sphi 0, %s50
      %s53 = sphi 0, %s52
      %s67 = sphi 0, %s53
      %s71 = sphi 0, %s71
      %s73 = sphi 0, %s71
      %s74 = sphi 0, %s73
      %s88 = sphi 0, %s74
      %s92 = sphi 0, %s92
      %s94 = sphi 0, %s92
      %s95 = sphi 0, %s94
      %s109 = sphi 0, %s95
      %s113 = sphi 0, %s113
      %s115 = sphi 0, %s113
      %s116 = sphi 0, %s115
      %s130 = sphi 0, %s116
      %s136 = sphi 0, %s138
      %s139 = sphi 0, %s136
      %s140 = sphi 0, %s139
      %s156 = sphi 0, %s140
    $region4: #{vit_block.2} parent=1 // loop_header_branch
      %19 = sbr.rel (%p17) target = $region8
    $region5: #{vit_block.2} parent=1 // loop_body
      %s21 = ssub.s32 %s16, 1
      %s22 = ssub.s32 %s16, 2
      %s23 = sadd.s32 %s16, 1
      %s24 = ssub.s32 %s16, %s23
      %p25 = scmp.eq.s32.totalorder %s24, 0
      %s27 = sadd.s32 %s26, 1
      %s28 = scalar_select %p25, %s26, %s27
      %p31 = pneg %p25
      %p32 = scmp.eq.s32.totalorder %s16, 1
      %p33 = por %p31, %p32
      %p34 = scmp.ne.s32.totalorder %s26, %s29
      %p35 = scmp.eq.s32.totalorder %s16, 0
      %p36 = por %p34, %p35
      %p37 = scmp.ne.s32.totalorder %s26, %s29
      %p38 = scmp.eq.s32.totalorder %s21, 1
      %p39 = por %p37, %p38
      %p40 = scmp.ne.s32.totalorder %s29, %s30
      %p41 = scmp.eq.s32.totalorder %s21, 0
      %p42 = por %p40, %p41
      %p43 = scmp.ne.s32.totalorder %s29, %s30
      %p44 = scmp.eq.s32.totalorder %s22, 1
      %p45 = por %p43, %p44
      %p47 = scmp.ne.s32.totalorder %s30, %s46
      %p48 = scmp.eq.s32.totalorder %s22, 0
      %p49 = por %p47, %p48
      %s51 = sadd.s32 %s50, 1
      %p54 = scmp.eq.s32.totalorder %s16, 1
      %p55 = scmp.ne.s32.totalorder %s50, %s52
      %p56 = scmp.eq.s32.totalorder %s16, 0
      %p57 = por %p55, %p56
      %p58 = scmp.ne.s32.totalorder %s50, %s52
      %p59 = scmp.eq.s32.totalorder %s21, 1
      %p60 = por %p58, %p59
      %p61 = scmp.ne.s32.totalorder %s52, %s53
      %p62 = scmp.eq.s32.totalorder %s21, 0
      %p63 = por %p61, %p62
      %p64 = scmp.ne.s32.totalorder %s52, %s53
      %p65 = scmp.eq.s32.totalorder %s22, 1
      %p66 = por %p64, %p65
      %p68 = scmp.ne.s32.totalorder %s53, %s67
      %p69 = scmp.eq.s32.totalorder %s22, 0
      %p70 = por %p68, %p69
      %s72 = sadd.s32 %s71, 1
      %p75 = scmp.eq.s32.totalorder %s16, 1
      %p76 = scmp.ne.s32.totalorder %s71, %s73
      %p77 = scmp.eq.s32.totalorder %s16, 0
      %p78 = por %p76, %p77
      %p79 = scmp.ne.s32.totalorder %s71, %s73
      %p80 = scmp.eq.s32.totalorder %s21, 1
      %p81 = por %p79, %p80
      %p82 = scmp.ne.s32.totalorder %s73, %s74
      %p83 = scmp.eq.s32.totalorder %s21, 0
      %p84 = por %p82, %p83
      %p85 = scmp.ne.s32.totalorder %s73, %s74
      %p86 = scmp.eq.s32.totalorder %s22, 1
      %p87 = por %p85, %p86
      %p89 = scmp.ne.s32.totalorder %s74, %s88
      %p90 = scmp.eq.s32.totalorder %s22, 0
      %p91 = por %p89, %p90
      %s93 = sadd.s32 %s92, 1
      %p96 = scmp.eq.s32.totalorder %s16, 1
      %p97 = scmp.ne.s32.totalorder %s92, %s94
      %p98 = scmp.eq.s32.totalorder %s16, 0
      %p99 = por %p97, %p98
      %p100 = scmp.ne.s32.totalorder %s92, %s94
      %p101 = scmp.eq.s32.totalorder %s21, 1
      %p102 = por %p100, %p101
      %p103 = scmp.ne.s32.totalorder %s94, %s95
      %p104 = scmp.eq.s32.totalorder %s21, 0
      %p105 = por %p103, %p104
      %p106 = scmp.ne.s32.totalorder %s94, %s95
      %p107 = scmp.eq.s32.totalorder %s22, 1
      %p108 = por %p106, %p107
      %p110 = scmp.ne.s32.totalorder %s95, %s109
      %p111 = scmp.eq.s32.totalorder %s22, 0
      %p112 = por %p110, %p111
      %s114 = sadd.s32 %s113, 1
      %p117 = scmp.eq.s32.totalorder %s16, 1
      %p118 = scmp.ne.s32.totalorder %s113, %s115
      %p119 = scmp.eq.s32.totalorder %s16, 0
      %p120 = por %p118, %p119
      %p121 = scmp.ne.s32.totalorder %s113, %s115
      %p122 = scmp.eq.s32.totalorder %s21, 1
      %p123 = por %p121, %p122
      %p124 = scmp.ne.s32.totalorder %s115, %s116
      %p125 = scmp.eq.s32.totalorder %s21, 0
      %p126 = por %p124, %p125
      %p127 = scmp.ne.s32.totalorder %s115, %s116
      %p128 = scmp.eq.s32.totalorder %s22, 1
      %p129 = por %p127, %p128
      %p131 = scmp.ne.s32.totalorder %s116, %s130
      %p132 = scmp.eq.s32.totalorder %s22, 0
      %p133 = por %p131, %p132
      %s134 = ssub.s32 %s16, %s23
      %p135 = scmp.eq.s32.totalorder %s134, 0
      %s137 = sadd.s32 %s136, 1
      %s138 = scalar_select %p135, %s136, %s137
      %p141 = pneg %p135
      %p142 = scmp.eq.s32.totalorder %s16, 1
      %p143 = por %p141, %p142
      %p144 = scmp.ne.s32.totalorder %s136, %s139
      %p145 = scmp.eq.s32.totalorder %s16, 0
      %p146 = por %p144, %p145
      %p147 = scmp.ne.s32.totalorder %s136, %s139
      %p148 = scmp.eq.s32.totalorder %s21, 1
      %p149 = por %p147, %p148
      %p150 = scmp.ne.s32.totalorder %s139, %s140
      %p151 = scmp.eq.s32.totalorder %s21, 0
      %p152 = por %p150, %p151
      %p153 = scmp.ne.s32.totalorder %s139, %s140
      %p154 = scmp.eq.s32.totalorder %s22, 1
      %p155 = por %p153, %p154
      %p157 = scmp.ne.s32.totalorder %s140, %s156
      %p158 = scmp.eq.s32.totalorder %s22, 0
      %p159 = por %p157, %p158
      %p160 = scmp.le.s32.totalorder 1, %s16
      %p161 = scmp.lt.s32.totalorder %s16, 3
      %p162 = pnand %p160, %p161
      %p163 = pneg %p162
      // Predicated region
      $region9: #{vit_block.2} parent=5 // pred_check
        _
      $region10: #{vit_block.2} parent=5 // pred_check_branch
        %165 = sbr.rel (%p162) target = $region12
      $region11: #{vit_block.2} parent=5 // pred_region
        %s166 = ssub.s32 %s16, 1
        // Predicated region
        $region13: #{vit_block.2} parent=11 // pred_check
          %p167 = pneg %p63
        $region14: #{vit_block.2} parent=11 // pred_check_branch
          %169 = sbr.rel (%p167) target = $region16
        $region15: #{vit_block.2} parent=11 // pred_region
          %171 = vsyncadd [#allocation5], 0
          %s173 = sshll.u32 %s1, 4
          %s174 = int_to_ptr.hbm [resolvable:$true] %s173
          %s175 = sshll.u32 [#allocation4], 4
          %s176 = int_to_ptr.vmem [resolvable:$true] %s175
          %178 = dma.hbm_to_vmem [thread:$0]  %s174, 16, %s176, [#allocation5]
        $region16: #{vit_block.2} parent=11 // pred_fallthru
          _
        // Predicated region
        $region17: #{vit_block.2} parent=11 // pred_check
          %p179 = pneg %p84
        $region18: #{vit_block.2} parent=11 // pred_check_branch
          %181 = sbr.rel (%p179) target = $region20
        $region19: #{vit_block.2} parent=11 // pred_region
          %183 = vsyncadd [#allocation5], 0
          %s185 = sshll.u32 %s2, 4
          %s186 = int_to_ptr.hbm [resolvable:$true] %s185
          %s187 = sshll.u32 [#allocation6], 4
          %s188 = int_to_ptr.vmem [resolvable:$true] %s187
          %190 = dma.hbm_to_vmem [thread:$0]  %s186, 16, %s188, [#allocation5]
        $region20: #{vit_block.2} parent=11 // pred_fallthru
          _
        // Predicated region
        $region21: #{vit_block.2} parent=11 // pred_check
          %p191 = pneg %p105
        $region22: #{vit_block.2} parent=11 // pred_check_branch
          %193 = sbr.rel (%p191) target = $region24
        $region23: #{vit_block.2} parent=11 // pred_region
          %195 = vsyncadd [#allocation8], 0
          %s196 = sshll.u32 %s3, 4
          %s197 = int_to_ptr.hbm [resolvable:$true] %s196
          %s198 = sshll.u32 [#allocation7], 4
          %s199 = int_to_ptr.vmem [resolvable:$true] %s198
          %204 = dma.hbm_to_vmem [thread:$0]  %s197, 512, %s199, [#allocation8], 128, 128, 8
        $region24: #{vit_block.2} parent=11 // pred_fallthru
          _
        // Predicated region
        $region25: #{vit_block.2} parent=11 // pred_check
          %p205 = pneg %p126
        $region26: #{vit_block.2} parent=11 // pred_check_branch
          %207 = sbr.rel (%p205) target = $region28
        $region27: #{vit_block.2} parent=11 // pred_region
          %209 = vsyncadd [#allocation8], 0
          %s211 = sshll.u32 %s4, 4
          %s212 = int_to_ptr.hbm [resolvable:$true] %s211
          %s213 = sshll.u32 [#allocation9], 4
          %s214 = int_to_ptr.vmem [resolvable:$true] %s213
          %216 = dma.hbm_to_vmem [thread:$0]  %s212, 16, %s214, [#allocation8]
        $region28: #{vit_block.2} parent=11 // pred_fallthru
          _
      $region12: #{vit_block.2} parent=5 // pred_fallthru
        _
      %p217 = scmp.lt.s32.totalorder %s16, 2
      // Predicated region
      $region29: #{vit_block.2} parent=5 // pred_check
        %p218 = pneg %p217
      $region30: #{vit_block.2} parent=5 // pred_check_branch
        %220 = sbr.rel (%p218) target = $region32
      $region31: #{vit_block.2} parent=5 // pred_region
        // Predicated region
        $region33: #{vit_block.2} parent=31 // pred_check
          %p221 = pneg %p36
        $region34: #{vit_block.2} parent=31 // pred_check_branch
          %223 = sbr.rel (%p221) target = $region36
        $region35: #{vit_block.2} parent=31 // pred_region
          %s224 = sand.u32 %s26, 1
          %s225 = scalar_lea.sflag [#allocation3], %s224
          %s226 = sand.u32 %s26, 1
          %s227 = smul.addr %s226, 8
          %s228 = scalar_lea.vmem [#allocation2], %s227
          %230 = vsyncadd %s225, 0
          %s231 = smul.addr %s16, 8
          %s232 = scalar_lea.hbm %s0, %s231
          %s234 = sshll.u32 %s232, 4
          %s235 = int_to_ptr.hbm [resolvable:$true] %s234
          %s236 = sshll.u32 %s228, 4
          %s237 = int_to_ptr.vmem [resolvable:$true] %s236
          %239 = dma.hbm_to_vmem [thread:$0]  %s235, 128, %s237, %s225
        $region36: #{vit_block.2} parent=31 // pred_fallthru
          _
      $region32: #{vit_block.2} parent=5 // pred_fallthru
        _
      %p240 = scmp.le.s32.totalorder 1, %s16
      %p241 = scmp.lt.s32.totalorder %s16, 3
      %p242 = pnand %p240, %p241
      %p243 = pneg %p242
      // Predicated region
      $region37: #{vit_block.2} parent=5 // pred_check
        _
      $region38: #{vit_block.2} parent=5 // pred_check_branch
        %245 = sbr.rel (%p242) target = $region40
      $region39: #{vit_block.2} parent=5 // pred_region
        %s246 = ssub.s32 %s16, 1
        %s247 = sand.u32 %s29, 1
        %s248 = scalar_lea.sflag [#allocation3], %s247
        %s249 = sand.u32 %s29, 1
        %s250 = smul.addr %s249, 8
        %s251 = scalar_lea.vmem [#allocation2], %s250
        // Predicated region
        $region41: #{vit_block.2} parent=39 // pred_check
          %p252 = pneg %p42
        $region42: #{vit_block.2} parent=39 // pred_check_branch
          %254 = sbr.rel (%p252) target = $region44
        $region43: #{vit_block.2} parent=39 // pred_region
          %256 = dma.done %s248, 128
        $region44: #{vit_block.2} parent=39 // pred_fallthru
          _
        // Predicated region
        $region45: #{vit_block.2} parent=39 // pred_check
          %p257 = pneg %p63
        $region46: #{vit_block.2} parent=39 // pred_check_branch
          %259 = sbr.rel (%p257) target = $region48
        $region47: #{vit_block.2} parent=39 // pred_region
          %261 = dma.done [#allocation5], 16
        $region48: #{vit_block.2} parent=39 // pred_fallthru
          _
        // Predicated region
        $region49: #{vit_block.2} parent=39 // pred_check
          %p262 = pneg %p84
        $region50: #{vit_block.2} parent=39 // pred_check_branch
          %264 = sbr.rel (%p262) target = $region52
        $region51: #{vit_block.2} parent=39 // pred_region
          %266 = dma.done [#allocation5], 16
        $region52: #{vit_block.2} parent=39 // pred_fallthru
          _
        // Predicated region
        $region53: #{vit_block.2} parent=39 // pred_check
          %p267 = pneg %p105
        $region54: #{vit_block.2} parent=39 // pred_check_branch
          %269 = sbr.rel (%p267) target = $region56
        $region55: #{vit_block.2} parent=39 // pred_region
          %271 = dma.done [#allocation8], 512
        $region56: #{vit_block.2} parent=39 // pred_fallthru
          _
        // Predicated region
        $region57: #{vit_block.2} parent=39 // pred_check
          %p272 = pneg %p126
        $region58: #{vit_block.2} parent=39 // pred_check_branch
          %274 = sbr.rel (%p272) target = $region60
        $region59: #{vit_block.2} parent=39 // pred_region
          %276 = dma.done [#allocation8], 16
        $region60: #{vit_block.2} parent=39 // pred_fallthru
          _
        %s277 = sand.u32 %s29, 1
        %s278 = scalar_lea.sflag [#allocation3], %s277
        %s279 = sand.u32 %s29, 1
        %s280 = smul.addr %s279, 8
        %s281 = scalar_lea.vmem [#allocation2], %s280
        %p282 = pneg %p42
        %p283 = pneg %p39
        %p284 = pneg %p63
        %p285 = pneg %p60
        %p286 = pneg %p84
        %p287 = pneg %p81
        %p288 = pneg %p105
        %p289 = pneg %p102
        %p290 = pneg %p126
        %p291 = pneg %p123
        %p292 = pneg %p152
        %p293 = pneg %p149
        %p294 = scmp.lt.s32.totalorder %s21, 1
        %s295 = scalar_select %p294, %s21, 1
        %s296 = smul.addr %s295, 8
        %s297 = scalar_lea.vmem %s5, %s296
        %p298 = scmp.lt.s32.totalorder %s21, 1
        %s299 = scalar_select %p298, %s21, 1
        %s300 = smul.addr %s299, 8
        %s301 = scalar_lea.vmem %s5, %s300
        %v302 = vld [vmem:[%s251] sm:$0xff]
        %v303 = vld [vmem:[#allocation4] sm:$0x1]
        %v304 = vld [vmem:[#allocation6] sm:$0x1]
        %vm305 = vcmask 261120
        %v306 = vsel %vm305, %v302, 0.0
        %307 = vadd.xlane.f32.xlu0 %v306
        %v308 = vpop.xlane.xlu0 %307
        %v309 = vrcp.pop 32.0
        %v310 = vmul.f32 32.0, %v309
        %v311 = vsub.f32 1.0, %v310
        %v312 = vmul.f32 %v309, %v311
        %v313 = vadd.f32 %v309, %v312
        %vm314 = vweird.f32 %v309
        %v315 = vsel %vm314, %v309, %v313
        %v316 = vmul.f32 %v308, %v315
        %v317 = vsub.f32 %v302, %v316
        %v318 = vmul.f32 %v317, %v317
        %v319 = vsel %vm305, %v318, 0.0
        %320 = vadd.xlane.f32.xlu0 %v319
        %v321 = vpop.xlane.xlu0 %320
        %v322 = vmul.f32 %v321, %v315
        %v323 = vadd.f32 %v322, 1e-05
        %v324 = vrsqrt.pop %v323
        %v325 = vmul.f32 %v324, %v323
        %v326 = vmul.f32 %v325, %v324
        %v327 = vmul.f32 0.5, %v326
        %v328 = vsub.f32 1.5, %v327
        %v329 = vmul.f32 %v324, %v328
        %vm330 = vweird.f32 %v323
        %vm331 = vweird.f32 %v324
        %vm332 = vmor %vm330, %vm331
        %v333 = vsel %vm332, %v324, %v329
        %v334 = vmul.f32 %v317, %v333
        %v336 = vperm.slane %v303, 0
        %v338 = vmul.f32 %v334, %v336
        %v340 = vperm.slane %v304, 0
        %v342 = vadd.f32 %v338, %v340
        %v343 = vld [vmem:[#allocation7] sm:$0xff]
        %v344 = vld [vmem:[#allocation7 + $0x8] sm:$0xff]
        %v345 = vld [vmem:[#allocation7 + $0x10] sm:$0xff]
        %v346 = vld [vmem:[#allocation7 + $0x18] sm:$0xff]
        %v347 = vld [vmem:[#allocation9] sm:$0x1]
        %v349 = vperm.slane %v347, 0
        %v352 = vsel %vm305, %v342, 0
        %354 = vmatpush.msra.mxu0 0.0
        %355 = vmatpush.msra.mxu0 0.0
        %356 = vmatpush.msra.mxu0 0.0
        %357 = vmatpush.msra.mxu0 0.0
        %358 = vmatpush.msra.mxu0 0.0
        %359 = vmatpush.msra.mxu0 0.0
        %360 = vmatpush.msra.mxu0 0.0
        %361 = vmatpush.msra.mxu0 0.0
        %362 = vmatpush.msra.mxu0 0.0
        %363 = vmatpush.msra.mxu0 0.0
        %364 = vmatpush.msra.mxu0 0.0
        %365 = vmatpush.msra.mxu0 0.0
        %366 = vmatpush.msra.mxu0 %v346
        %367 = vmatpush.msra.mxu0 %v345
        %368 = vmatpush.msra.mxu0 %v344
        %369 = vmatpush.msra.mxu0 %v343
        %370 = vmatmul.f32.gmra.mxu0 %v352
        %v371 = vpop.f32.mrf.mxu0
        %v372 = vadd.f32 %v349, %v371
        %373 = vdwg.mxu0
        %375 = vrot.lane.b32.xlu0 %v372, 96
        %v376 = vpop.permute.xlu0 %375
        %vm377 = vcmask 64512
        %v378 = vsel %vm377, %v372, 0
        %v380 = vsel %vm377, %v376, 0
        %382 = vmatpush.xpose.msra.mxu0 0.0
        %383 = vmatpush.xpose.msra.mxu0 0.0
        %384 = vmatpush.xpose.msra.mxu0 0.0
        %385 = vmatpush.xpose.msra.mxu0 0.0
        %386 = vmatpush.xpose.msra.mxu0 0.0
        %387 = vmatpush.xpose.msra.mxu0 0.0
        %388 = vmatpush.xpose.msra.mxu0 0.0
        %389 = vmatpush.xpose.msra.mxu0 0.0
        %390 = vmatpush.xpose.msra.mxu0 0.0
        %391 = vmatpush.xpose.msra.mxu0 0.0
        %392 = vmatpush.xpose.msra.mxu0 0.0
        %393 = vmatpush.xpose.msra.mxu0 0.0
        %394 = vmatpush.xpose.msra.mxu0 0.0
        %395 = vmatpush.xpose.msra.mxu0 0.0
        %396 = vmatpush.xpose.msra.mxu0 0.0
        %397 = vmatpush.xpose.msra.mxu0 %v380
        %398 = vmatmul.f32.gmra.mxu0 %v378
        %v399 = vpop.f32.mrf.mxu0
        %v400 = vadd.f32 0.0, %v399
        %401 = vdwg.mxu0
        %v402 = vmul.f32 %v400, 0.35355338
        %v403 = vsel %vm377, %v402, -inf
        %404 = vmax.xlane.f32.xlu0 %v403
        %v405 = vpop.xlane.xlu0 %404
        %v406 = vsub.f32 %v402, %v405
        %v407 = vmul.f32 %v406, 1.442695
        %v408 = vpow.pop %v407
        %v409 = vsel %vm377, %v408, 0.0
        %410 = vadd.xlane.f32.xlu0 %v409
        %v411 = vpop.xlane.xlu0 %410
        %v412 = vrcp.pop %v411
        %v413 = vmul.f32 %v411, %v412
        %v414 = vsub.f32 1.0, %v413
        %v415 = vmul.f32 %v412, %v414
        %v416 = vadd.f32 %v412, %v415
        %vm417 = vweird.f32 %v411
        %vm418 = vweird.f32 %v412
        %vm419 = vmor %vm417, %vm418
        %v420 = vsel %vm419, %v412, %v416
        %v421 = vand.u32 2147483647, %v411
        %vm422 = vcmp.eq.f32.partialorder %v421, 8.507059e+37
        %v423 = vand.u32 %v411, 2147483648
        %v424 = vor.u32 1.1754944e-38, %v423
        %v425 = vsel %vm422, %v424, %v420
        %v426 = vmul.f32 %v408, %v425
        %427 = vrot.lane.b32.xlu0 %v372, 64
        %v428 = vpop.permute.xlu0 %427
        %v431 = vsel %vm377, %v426, 0
        %433 = vmatpush.msra.mxu0 0.0
        %434 = vmatpush.msra.mxu0 0.0
        %435 = vmatpush.msra.mxu0 0.0
        %436 = vmatpush.msra.mxu0 0.0
        %437 = vmatpush.msra.mxu0 0.0
        %438 = vmatpush.msra.mxu0 0.0
        %439 = vmatpush.msra.mxu0 0.0
        %440 = vmatpush.msra.mxu0 0.0
        %441 = vmatpush.msra.mxu0 0.0
        %442 = vmatpush.msra.mxu0 0.0
        %443 = vmatpush.msra.mxu0 0.0
        %444 = vmatpush.msra.mxu0 0.0
        %445 = vmatpush.msra.mxu0 0.0
        %446 = vmatpush.msra.mxu0 0.0
        %447 = vmatpush.msra.mxu0 0.0
        %448 = vmatpush.msra.mxu0 %v428
        %449 = vmatmul.f32.gmra.mxu0 %v431
        %v450 = vpop.f32.mrf.mxu0
        %v451 = vadd.f32 %v342, %v450
        %452 = vdwg.mxu0
        %453 = vst.msk [vmem:[%s301] sm:$0xff] %vm377, %v451
        %454 = vrot.lane.b32.xlu0 %v372, 120
        %v455 = vpop.permute.xlu0 %454
        %456 = vrot.lane.b32.xlu0 %v372, 88
        %v457 = vpop.permute.xlu0 %456
        %v458 = vsel %vm377, %v455, 0
        %v460 = vsel %vm377, %v457, 0
        %462 = vmatpush.xpose.msra.mxu0 0.0
        %463 = vmatpush.xpose.msra.mxu0 0.0
        %464 = vmatpush.xpose.msra.mxu0 0.0
        %465 = vmatpush.xpose.msra.mxu0 0.0
        %466 = vmatpush.xpose.msra.mxu0 0.0
        %467 = vmatpush.xpose.msra.mxu0 0.0
        %468 = vmatpush.xpose.msra.mxu0 0.0
        %469 = vmatpush.xpose.msra.mxu0 0.0
        %470 = vmatpush.xpose.msra.mxu0 0.0
        %471 = vmatpush.xpose.msra.mxu0 0.0
        %472 = vmatpush.xpose.msra.mxu0 0.0
        %473 = vmatpush.xpose.msra.mxu0 0.0
        %474 = vmatpush.xpose.msra.mxu0 0.0
        %475 = vmatpush.xpose.msra.mxu0 0.0
        %476 = vmatpush.xpose.msra.mxu0 0.0
        %477 = vmatpush.xpose.msra.mxu0 %v460
        %478 = vmatmul.f32.gmra.mxu0 %v458
        %v479 = vpop.f32.mrf.mxu0
        %v480 = vadd.f32 0.0, %v479
        %481 = vdwg.mxu0
        %v482 = vmul.f32 %v480, 0.35355338
        %v483 = vsel %vm377, %v482, -inf
        %484 = vmax.xlane.f32.xlu0 %v483
        %v485 = vpop.xlane.xlu0 %484
        %v486 = vsub.f32 %v482, %v485
        %v487 = vmul.f32 %v486, 1.442695
        %v488 = vpow.pop %v487
        %v489 = vsel %vm377, %v488, 0.0
        %490 = vadd.xlane.f32.xlu0 %v489
        %v491 = vpop.xlane.xlu0 %490
        %v492 = vrcp.pop %v491
        %v493 = vmul.f32 %v491, %v492
        %v494 = vsub.f32 1.0, %v493
        %v495 = vmul.f32 %v492, %v494
        %v496 = vadd.f32 %v492, %v495
        %vm497 = vweird.f32 %v491
        %vm498 = vweird.f32 %v492
        %vm499 = vmor %vm497, %vm498
        %v500 = vsel %vm499, %v492, %v496
        %v501 = vand.u32 2147483647, %v491
        %vm502 = vcmp.eq.f32.partialorder %v501, 8.507059e+37
        %v503 = vand.u32 %v491, 2147483648
        %v504 = vor.u32 1.1754944e-38, %v503
        %v505 = vsel %vm502, %v504, %v500
        %v506 = vmul.f32 %v488, %v505
        %507 = vrot.lane.b32.xlu0 %v372, 56
        %v508 = vpop.permute.xlu0 %507
        %510 = vrot.lane.b32.xlu0 %v342, 120
        %v511 = vpop.permute.xlu0 %510
        %v514 = vsel %vm377, %v506, 0
        %516 = vmatpush.msra.mxu0 0.0
        %517 = vmatpush.msra.mxu0 0.0
        %518 = vmatpush.msra.mxu0 0.0
        %519 = vmatpush.msra.mxu0 0.0
        %520 = vmatpush.msra.mxu0 0.0
        %521 = vmatpush.msra.mxu0 0.0
        %522 = vmatpush.msra.mxu0 0.0
        %523 = vmatpush.msra.mxu0 0.0
        %524 = vmatpush.msra.mxu0 0.0
        %525 = vmatpush.msra.mxu0 0.0
        %526 = vmatpush.msra.mxu0 0.0
        %527 = vmatpush.msra.mxu0 0.0
        %528 = vmatpush.msra.mxu0 0.0
        %529 = vmatpush.msra.mxu0 0.0
        %530 = vmatpush.msra.mxu0 0.0
        %531 = vmatpush.msra.mxu0 %v508
        %532 = vmatmul.f32.gmra.mxu0 %v514
        %v533 = vpop.f32.mrf.mxu0
        %v534 = vadd.f32 %v511, %v533
        %535 = vdwg.mxu0
        %537 = vrot.lane.b32.xlu0 %v534, 8
        %v538 = vpop.permute.xlu0 %537
        %vm540 = vcmask 130112
        %541 = vst.msk [vmem:[%s301] sm:$0xff] %vm540, %v538
        %542 = vrot.lane.b32.xlu0 %v372, 112
        %v543 = vpop.permute.xlu0 %542
        %544 = vrot.lane.b32.xlu0 %v372, 80
        %v545 = vpop.permute.xlu0 %544
        %v546 = vsel %vm377, %v543, 0
        %v548 = vsel %vm377, %v545, 0
        %550 = vmatpush.xpose.msra.mxu0 0.0
        %551 = vmatpush.xpose.msra.mxu0 0.0
        %552 = vmatpush.xpose.msra.mxu0 0.0
        %553 = vmatpush.xpose.msra.mxu0 0.0
        %554 = vmatpush.xpose.msra.mxu0 0.0
        %555 = vmatpush.xpose.msra.mxu0 0.0
        %556 = vmatpush.xpose.msra.mxu0 0.0
        %557 = vmatpush.xpose.msra.mxu0 0.0
        %558 = vmatpush.xpose.msra.mxu0 0.0
        %559 = vmatpush.xpose.msra.mxu0 0.0
        %560 = vmatpush.xpose.msra.mxu0 0.0
        %561 = vmatpush.xpose.msra.mxu0 0.0
        %562 = vmatpush.xpose.msra.mxu0 0.0
        %563 = vmatpush.xpose.msra.mxu0 0.0
        %564 = vmatpush.xpose.msra.mxu0 0.0
        %565 = vmatpush.xpose.msra.mxu0 %v548
        %566 = vmatmul.f32.gmra.mxu0 %v546
        %v567 = vpop.f32.mrf.mxu0
        %v568 = vadd.f32 0.0, %v567
        %569 = vdwg.mxu0
        %v570 = vmul.f32 %v568, 0.35355338
        %v571 = vsel %vm377, %v570, -inf
        %572 = vmax.xlane.f32.xlu0 %v571
        %v573 = vpop.xlane.xlu0 %572
        %v574 = vsub.f32 %v570, %v573
        %v575 = vmul.f32 %v574, 1.442695
        %v576 = vpow.pop %v575
        %v577 = vsel %vm377, %v576, 0.0
        %578 = vadd.xlane.f32.xlu0 %v577
        %v579 = vpop.xlane.xlu0 %578
        %v580 = vrcp.pop %v579
        %v581 = vmul.f32 %v579, %v580
        %v582 = vsub.f32 1.0, %v581
        %v583 = vmul.f32 %v580, %v582
        %v584 = vadd.f32 %v580, %v583
        %vm585 = vweird.f32 %v579
        %vm586 = vweird.f32 %v580
        %vm587 = vmor %vm585, %vm586
        %v588 = vsel %vm587, %v580, %v584
        %v589 = vand.u32 2147483647, %v579
        %vm590 = vcmp.eq.f32.partialorder %v589, 8.507059e+37
        %v591 = vand.u32 %v579, 2147483648
        %v592 = vor.u32 1.1754944e-38, %v591
        %v593 = vsel %vm590, %v592, %v588
        %v594 = vmul.f32 %v576, %v593
        %595 = vrot.lane.b32.xlu0 %v372, 48
        %v596 = vpop.permute.xlu0 %595
        %598 = vrot.lane.b32.xlu0 %v342, 112
        %v599 = vpop.permute.xlu0 %598
        %v602 = vsel %vm377, %v594, 0
        %604 = vmatpush.msra.mxu0 0.0
        %605 = vmatpush.msra.mxu0 0.0
        %606 = vmatpush.msra.mxu0 0.0
        %607 = vmatpush.msra.mxu0 0.0
        %608 = vmatpush.msra.mxu0 0.0
        %609 = vmatpush.msra.mxu0 0.0
        %610 = vmatpush.msra.mxu0 0.0
        %611 = vmatpush.msra.mxu0 0.0
        %612 = vmatpush.msra.mxu0 0.0
        %613 = vmatpush.msra.mxu0 0.0
        %614 = vmatpush.msra.mxu0 0.0
        %615 = vmatpush.msra.mxu0 0.0
        %616 = vmatpush.msra.mxu0 0.0
        %617 = vmatpush.msra.mxu0 0.0
        %618 = vmatpush.msra.mxu0 0.0
        %619 = vmatpush.msra.mxu0 %v596
        %620 = vmatmul.f32.gmra.mxu0 %v602
        %v621 = vpop.f32.mrf.mxu0
        %v622 = vadd.f32 %v599, %v621
        %623 = vdwg.mxu0
        %625 = vrot.lane.b32.xlu0 %v622, 16
        %v626 = vpop.permute.xlu0 %625
        %vm628 = vcmask 195712
        %629 = vst.msk [vmem:[%s301] sm:$0xff] %vm628, %v626
        %630 = vrot.lane.b32.xlu0 %v372, 104
        %v631 = vpop.permute.xlu0 %630
        %632 = vrot.lane.b32.xlu0 %v372, 72
        %v633 = vpop.permute.xlu0 %632
        %v634 = vsel %vm377, %v631, 0
        %v636 = vsel %vm377, %v633, 0
        %638 = vmatpush.xpose.msra.mxu0 0.0
        %639 = vmatpush.xpose.msra.mxu0 0.0
        %640 = vmatpush.xpose.msra.mxu0 0.0
        %641 = vmatpush.xpose.msra.mxu0 0.0
        %642 = vmatpush.xpose.msra.mxu0 0.0
        %643 = vmatpush.xpose.msra.mxu0 0.0
        %644 = vmatpush.xpose.msra.mxu0 0.0
        %645 = vmatpush.xpose.msra.mxu0 0.0
        %646 = vmatpush.xpose.msra.mxu0 0.0
        %647 = vmatpush.xpose.msra.mxu0 0.0
        %648 = vmatpush.xpose.msra.mxu0 0.0
        %649 = vmatpush.xpose.msra.mxu0 0.0
        %650 = vmatpush.xpose.msra.mxu0 0.0
        %651 = vmatpush.xpose.msra.mxu0 0.0
        %652 = vmatpush.xpose.msra.mxu0 0.0
        %653 = vmatpush.xpose.msra.mxu0 %v636
        %654 = vmatmul.f32.gmra.mxu0 %v634
        %v655 = vpop.f32.mrf.mxu0
        %v656 = vadd.f32 0.0, %v655
        %657 = vdwg.mxu0
        %v658 = vmul.f32 %v656, 0.35355338
        %v659 = vsel %vm377, %v658, -inf
        %660 = vmax.xlane.f32.xlu0 %v659
        %v661 = vpop.xlane.xlu0 %660
        %v662 = vsub.f32 %v658, %v661
        %v663 = vmul.f32 %v662, 1.442695
        %v664 = vpow.pop %v663
        %v665 = vsel %vm377, %v664, 0.0
        %666 = vadd.xlane.f32.xlu0 %v665
        %v667 = vpop.xlane.xlu0 %666
        %v668 = vrcp.pop %v667
        %v669 = vmul.f32 %v667, %v668
        %v670 = vsub.f32 1.0, %v669
        %v671 = vmul.f32 %v668, %v670
        %v672 = vadd.f32 %v668, %v671
        %vm673 = vweird.f32 %v667
        %vm674 = vweird.f32 %v668
        %vm675 = vmor %vm673, %vm674
        %v676 = vsel %vm675, %v668, %v672
        %v677 = vand.u32 2147483647, %v667
        %vm678 = vcmp.eq.f32.partialorder %v677, 8.507059e+37
        %v679 = vand.u32 %v667, 2147483648
        %v680 = vor.u32 1.1754944e-38, %v679
        %v681 = vsel %vm678, %v680, %v676
        %v682 = vmul.f32 %v664, %v681
        %683 = vrot.lane.b32.xlu0 %v372, 40
        %v684 = vpop.permute.xlu0 %683
        %686 = vrot.lane.b32.xlu0 %v342, 104
        %v687 = vpop.permute.xlu0 %686
        %v690 = vsel %vm377, %v682, 0
        %692 = vmatpush.msra.mxu0 0.0
        %693 = vmatpush.msra.mxu0 0.0
        %694 = vmatpush.msra.mxu0 0.0
        %695 = vmatpush.msra.mxu0 0.0
        %696 = vmatpush.msra.mxu0 0.0
        %697 = vmatpush.msra.mxu0 0.0
        %698 = vmatpush.msra.mxu0 0.0
        %699 = vmatpush.msra.mxu0 0.0
        %700 = vmatpush.msra.mxu0 0.0
        %701 = vmatpush.msra.mxu0 0.0
        %702 = vmatpush.msra.mxu0 0.0
        %703 = vmatpush.msra.mxu0 0.0
        %704 = vmatpush.msra.mxu0 0.0
        %705 = vmatpush.msra.mxu0 0.0
        %706 = vmatpush.msra.mxu0 0.0
        %707 = vmatpush.msra.mxu0 %v684
        %708 = vmatmul.f32.gmra.mxu0 %v690
        %v709 = vpop.f32.mrf.mxu0
        %v710 = vadd.f32 %v687, %v709
        %711 = vdwg.mxu0
        %713 = vrot.lane.b32.xlu0 %v710, 24
        %v714 = vpop.permute.xlu0 %713
        %vm716 = vcmask 261312
        %717 = vst.msk [vmem:[%s301] sm:$0xff] %vm716, %v714
        %p718 = scmp.lt.s32.totalorder %s21, 1
        %s719 = scalar_select %p718, %s21, 1
        %s720 = smul.addr %s719, 8
        %s721 = scalar_lea.vmem %s5, %s720
        // Predicated region
        $region61: #{vit_block.2} parent=39 // pred_check
          %p722 = pneg %p149
        $region62: #{vit_block.2} parent=39 // pred_check_branch
          %724 = sbr.rel (%p722) target = $region64
        $region63: #{vit_block.2} parent=39 // pred_region
          _
        $region64: #{vit_block.2} parent=39 // pred_fallthru
          _
      $region40: #{vit_block.2} parent=5 // pred_fallthru
        _
      %p725 = scmp.le.s32.totalorder 2, %s16
      // Predicated region
      $region65: #{vit_block.2} parent=5 // pred_check
        %p726 = pneg %p725
      $region66: #{vit_block.2} parent=5 // pred_check_branch
        %728 = sbr.rel (%p726) target = $region68
      $region67: #{vit_block.2} parent=5 // pred_region
        %s729 = ssub.s32 %s16, 2
        // Predicated region
        $region69: #{vit_block.2} parent=67 // pred_check
          %p730 = pneg %p155
        $region70: #{vit_block.2} parent=67 // pred_check_branch
          %732 = sbr.rel (%p730) target = $region72
        $region71: #{vit_block.2} parent=67 // pred_region
          %p733 = scmp.lt.s32.totalorder %s22, 1
          %s734 = scalar_select %p733, %s22, 1
          %s735 = smul.addr %s734, 8
          %s736 = scalar_lea.vmem %s5, %s735
        $region72: #{vit_block.2} parent=67 // pred_fallthru
          _
      $region68: #{vit_block.2} parent=5 // pred_fallthru
        _
    $region6: #{vit_block.2} parent=1 // loop_footer
      %s20 = sadd.s32 1, %s16
    $region7: #{vit_block.2} parent=1 // loop_footer_branch
      %15 = sbr.rel target = $region3
    $region8: #{vit_block.2} parent=1 // loop_exit
      _
    %737 = vsyncpa [#allocation3], 1
    %s738 = scalar_lea.sflag [#allocation3], 1
    %739 = vsyncpa %s738, 1
    %740 = vsyncpa [#allocation5], 1
    %741 = vsyncpa [#allocation8], 1

</llo_original>
